<compile_context>
chip_gen: v7x
topology: tpu7x:2x2x1
jax: 0.10.0
libtpu: 0.0.40
codegen_flags: <defaults>
</compile_context>

<pallas_src>
import jax
import jax.numpy as jnp
from jax.experimental import pallas as pl
from jax.experimental.pallas import tpu as pltpu  # noqa: F401  (TPU backend)


# ---------------------------------------------------------------------------
# BlockSpec helper: one block covering the whole array, grid=(1,)
# ---------------------------------------------------------------------------
def _full_spec(shape):
    return pl.BlockSpec(shape, lambda *_: (0,) * len(shape))


# ---------------------------------------------------------------------------
# Fully fused Critic kernel
# ---------------------------------------------------------------------------
def _build_fused_kernel(cfg, batch):
    H1p, H4 = cfg["H1p"], cfg["H4"]
    conv_dims = ((cfg["H2"], cfg["W2"]), (cfg["H3"], cfg["W3"]),
                 (cfg["H4"], cfg["W4"]))
    off = cfg["bias_offsets"]          # name -> (lane_start, width), static ints
    bf16 = jnp.bfloat16

    def kernel(p1_ref, act_ref,
               w1_ref, w2_ref, w3_ref, w4_ref, hw_ref,
               qw1f_ref, qw1a_ref, qw2_ref, qw3_ref, bias_ref,
               o_ref):
        def bias(name):
            s, w = off[name]
            return bias_ref[:, s:s + w]          # lane-aligned static slice (f32)

        # --- conv1 (stride 2): single batched matmul on pre-im2col'd rows ----
        x1 = jnp.dot(p1_ref[...], w1_ref[...],
                     preferred_element_type=jnp.float32)
        x1 = jnp.maximum(x1 + bias("b1"), 0.0)    # (batch*H1p, W1*nf), f32

        # --- conv2..conv4 + head Linear, per sample ---------------------------
        feat_rows = []
        for n in range(batch):                    # batch is tiny; static unroll
            x = x1[n * H1p:(n + 1) * H1p, :]      # 8-row aligned slab
            for (w_ref, bname, (Ho, Wo)) in ((w2_ref, "b2", conv_dims[0]),
                                             (w3_ref, "b3", conv_dims[1]),
                                             (w4_ref, "b4", conv_dims[2])):
                xb = x.astype(bf16)
                acc = bias(bname)                 # (1, Wo*nf), f32
                for i in range(3):                # j-shift folded into weights
                    acc = acc + jnp.dot(xb[i:i + Ho, :], w_ref[i],
                                        preferred_element_type=jnp.float32)
                x = jnp.maximum(acc, 0.0)         # (Ho, Wo*nf)

            xb = x.astype(bf16)
            y = bias("hb")                        # (1, F)
            for h in range(H4):                   # H4 == 1 at this config
                y = y + jnp.dot(xb[h:h + 1, :], hw_ref[h],
                                preferred_element_type=jnp.float32)
            feat_rows.append(y)

        y_all = jnp.concatenate(feat_rows, axis=0) if batch > 1 else feat_rows[0]

        # --- LayerNorm(eps=1e-5) + tanh, batched, f32 --------------------------
        mean = jnp.mean(y_all, axis=-1, keepdims=True)
        var = jnp.mean(jnp.square(y_all - mean), axis=-1, keepdims=True)
        feat = jnp.tanh((y_all - mean) * jax.lax.rsqrt(var + 1e-5)
                        * bias("g") + bias("beta"))          # (batch, F)

        # --- Q1/Q2 merged into one stacked MLP, batched across samples ---------
        h1 = jnp.maximum(
            jnp.dot(feat.astype(bf16), qw1f_ref[...],
                    preferred_element_type=jnp.float32)
            + jnp.dot(act_ref[...], qw1a_ref[...],
                      preferred_element_type=jnp.float32)
            + bias("qb1"), 0.0)                              # (batch, 2*hid)
        h2 = jnp.maximum(
            jnp.dot(h1.astype(bf16), qw2_ref[...],
                    preferred_element_type=jnp.float32)
            + bias("qb2"), 0.0)                              # (batch, 2*hid)
        o_ref[...] = (jnp.dot(h2.astype(bf16), qw3_ref[...],
                              preferred_element_type=jnp.float32)
                      + bias("qb3"))                         # (batch, 2)

    return kernel


# ---------------------------------------------------------------------------
# Per-forward glue: stride-2 im2col of the raw observation (tiny, XLA),
# padded to 8 rows per sample so per-sample slices stay sublane-tile aligned.
# rows: n*H1p + ho ; cols: wo*(9*Cin) + (i*3+j)*Cin + c
# ---------------------------------------------------------------------------
def _conv1_patches(obs_f32, H1, W1, H1p, stride=2, k=3):
    N, C, H, W = obs_f32.shape
    x = jnp.transpose(obs_f32, (0, 2, 3, 1))                 # NHWC
    cols = [x[:, i:i + stride * H1:stride, j:j + stride * W1:stride, :]
            for i in range(k) for j in range(k)]             # each (N, H1, W1, C)
    p = jnp.stack(cols, axis=3)                              # (N, H1, W1, 9, C)
    p = p.reshape(N, H1, W1 * k * k * C)
    p = jnp.pad(p, ((0, 0), (0, H1p - H1), (0, 0)))          # pad H1 -> H1p rows
    return p.reshape(N * H1p, W1 * k * k * C)


# ---------------------------------------------------------------------------
# One-time parameter preparation (outside the jitted hot path)
# ---------------------------------------------------------------------------
def prepare_params(params, obs_shape):
    Cin, H, W = obs_shape
    nf = params["conv1_w"].shape[0]
    k = 3
    H1, W1 = (H - k) // 2 + 1, (W - k) // 2 + 1
    H2, W2 = H1 - 2, W1 - 2
    H3, W3 = H2 - 2, W2 - 2
    H4, W4 = H3 - 2, W3 - 2
    H1p = ((H1 + 7) // 8) * 8
    F = params["head_w"].shape[0]
    hid = params["q1"]["w1"].shape[0]
    A = params["q1"]["w1"].shape[1] - F
    f32, bf16 = jnp.float32, jnp.bfloat16

    # conv1: fold 1/255 into the weights; block-diagonal over output width.
    wm1 = jnp.transpose(params["conv1_w"] / 255.0, (2, 3, 1, 0)).reshape(k * k * Cin, nf)
    w1b = jnp.kron(jnp.eye(W1, dtype=f32), wm1).astype(bf16)  # (W1*9*Cin, W1*nf)
    b1t = jnp.tile(params["conv1_b"], W1)[None, :]

    # conv2..4: fold the j (width) shift into the weights; one (W_in*nf, Wo*nf)
    # matrix per i-row of the 3x3 window, so the kernel slices sublanes only.
    def conv_folded(wt, b, W_in, Wo):
        ws = []
        for i in range(k):
            w_i = sum(jnp.kron(jnp.eye(W_in, Wo, k=-j, dtype=f32),
                               wt[:, :, i, j].T.astype(f32))
                      for j in range(k))
            ws.append(w_i)
        return jnp.stack(ws, axis=0).astype(bf16), jnp.tile(b, Wo)[None, :]

    w2b, b2t = conv_folded(params["conv2_w"], params["conv2_b"], W1, W2)
    w3b, b3t = conv_folded(params["conv3_w"], params["conv3_b"], W2, W3)
    w4b, b4t = conv_folded(params["conv4_w"], params["conv4_b"], W3, W4)

    # head weight: torch flatten order is (c, h, w); re-pack to [h][w*nf + c, f]
    hw = params["head_w"].reshape(F, nf, H4, W4)
    hw = jnp.transpose(hw, (2, 3, 1, 0)).reshape(H4, W4 * nf, F).astype(bf16)

    # Q1/Q2 merged: layer-1 split into feature/action halves, layers 2/3 block-diag.
    q1, q2 = params["q1"], params["q2"]
    w1_both = jnp.concatenate([q1["w1"].T, q2["w1"].T], axis=1)        # (F+A, 2*hid)
    qw1f, qw1a = w1_both[:F].astype(bf16), w1_both[F:].astype(bf16)
    qb1 = jnp.concatenate([q1["b1"], q2["b1"]])[None, :]
    zh = jnp.zeros((hid, hid), f32)
    qw2 = jnp.block([[q1["w2"].T, zh], [zh, q2["w2"].T]]).astype(bf16)  # (2*hid, 2*hid)
    qb2 = jnp.concatenate([q1["b2"], q2["b2"]])[None, :]
    z1 = jnp.zeros((hid, 1), f32)
    qw3 = jnp.block([[q1["w3"].T, z1], [z1, q2["w3"].T]]).astype(bf16)  # (2*hid, 2)
    qb3 = jnp.concatenate([q1["b3"], q2["b3"]])[None, :]

    # Pack all tiny (1, n) vectors into one lane-aligned f32 row (static offsets).
    segs = [("b1", b1t), ("b2", b2t), ("b3", b3t), ("b4", b4t),
            ("hb", params["head_b"][None, :]),
            ("g", params["ln_g"][None, :]), ("beta", params["ln_b"][None, :]),
            ("qb1", qb1), ("qb2", qb2), ("qb3", qb3)]
    offsets, chunks, pos = {}, [], 0
    for name, v in segs:
        v = v.astype(f32)
        w = int(v.shape[1])
        wpad = ((w + 127) // 128) * 128
        offsets[name] = (pos, w)
        chunks.append(jnp.pad(v, ((0, 0), (0, wpad - w))))
        pos += wpad
    biasvec = jnp.concatenate(chunks, axis=1)                # (1, total) f32

    weights = (w1b, w2b, w3b, w4b, hw, qw1f, qw1a, qw2, qw3, biasvec)
    cfg = dict(Cin=Cin, nf=nf, F=F, A=A, hid=hid,
               H1=H1, W1=W1, H1p=H1p, H2=H2, W2=W2, H3=H3, W3=W3, H4=H4, W4=W4,
               bias_offsets=offsets)
    return weights, cfg


# ---------------------------------------------------------------------------
# Critic forward (single fused pallas_call)
# ---------------------------------------------------------------------------
def make_critic_forward(cfg):
    @jax.jit
    def forward(weights, obs, action):
        N = obs.shape[0]
        p1 = _conv1_patches(obs.astype(jnp.float32),
                            cfg["H1"], cfg["W1"], cfg["H1p"]).astype(jnp.bfloat16)
        act = action.astype(jnp.bfloat16)
        args = (p1, act) + tuple(weights)
        out = pl.pallas_call(
            _build_fused_kernel(cfg, N),
            out_shape=jax.ShapeDtypeStruct((N, 2), jnp.float32),
            grid=(1,),
            in_specs=[_full_spec(a.shape) for a in args],
            out_specs=_full_spec((N, 2)),
        )(*args)
        return out[:, 0:1], out[:, 1:2]
    return forward


# ---------------------------------------------------------------------------
# Pure-JAX reference (mirrors the PyTorch module) for a sanity check
# ---------------------------------------------------------------------------
def _reference_forward(params, obs, action):
    x = obs.astype(jnp.float32) / 255.0
    dn = ("NCHW", "OIHW", "NCHW")
    for idx, s in ((1, 2), (2, 1), (3, 1), (4, 1)):
        x = jax.lax.conv_general_dilated(x, params[f"conv{idx}_w"], (s, s),
                                         "VALID", dimension_numbers=dn)
        x = jnp.maximum(x + params[f"conv{idx}_b"][None, :, None, None], 0.0)
    h = x.reshape(x.shape[0], -1)
    y = h @ params["head_w"].T + params["head_b"]
    mu = y.mean(-1, keepdims=True)
    var = ((y - mu) ** 2).mean(-1, keepdims=True)
    feat = jnp.tanh((y - mu) / jnp.sqrt(var + 1e-5) * params["ln_g"] + params["ln_b"])
    oa = jnp.concatenate([feat, action.astype(jnp.float32)], axis=-1)

    def q(qp):
        h1 = jnp.maximum(oa @ qp["w1"].T + qp["b1"], 0.0)
        h2 = jnp.maximum(h1 @ qp["w2"].T + qp["b2"], 0.0)
        return h2 @ qp["w3"].T + qp["b3"]

    return q(params["q1"]), q(params["q2"])


# ---------------------------------------------------------------------------
# Deterministic parameter init (synthetic; shapes follow the PyTorch module)
# ---------------------------------------------------------------------------
def init_params(key, obs_shape, feature_dim, action_dim, hidden_dim):
    nf = 32
    keys = jax.random.split(key, 16)

    def w(k, shape, scale=0.05):
        return (scale * jax.random.normal(k, shape)).astype(jnp.float32)

    C, H, W = obs_shape
    params = {
        "conv1_w": w(keys[0], (nf, C, 3, 3)),
        "conv1_b": jnp.zeros((nf,), jnp.float32),
    }
    for i, k in zip((2, 3, 4), keys[1:4]):
        params[f"conv{i}_w"] = w(k, (nf, nf, 3, 3))
        params[f"conv{i}_b"] = jnp.zeros((nf,), jnp.float32)

    # replicate Encoder.__init__ shape probe
    Ho, Wo = (H - 3) // 2 + 1, (W - 3) // 2 + 1
    for _ in range(3):
        Ho, Wo = Ho - 2, Wo - 2
    fc_in = nf * Ho * Wo

    params["head_w"] = w(keys[4], (feature_dim, fc_in))
    params["head_b"] = jnp.zeros((feature_dim,), jnp.float32)
    params["ln_g"] = jnp.ones((feature_dim,), jnp.float32)
    params["ln_b"] = jnp.zeros((feature_dim,), jnp.float32)

    in_dim = feature_dim + action_dim  # hidden_depth = 2 (Lin,ReLU,Lin,ReLU,Lin)
    for q, ko in (("q1", 5), ("q2", 9)):
        params[q] = {
            "w1": w(keys[ko], (hidden_dim, in_dim)),
            "b1": jnp.zeros((hidden_dim,), jnp.float32),
            "w2": w(keys[ko + 1], (hidden_dim, hidden_dim)),
            "b2": jnp.zeros((hidden_dim,), jnp.float32),
            "w3": w(keys[ko + 2], (1, hidden_dim)),
            "b3": jnp.zeros((1,), jnp.float32),
        }
    return params


if __name__ == "__main__":
    obs_shape = (4, 16, 16)   # (C, H, W): 16 -> 7 -> 5 -> 3 -> 1 spatially
    feature_dim = 32
    action_dim = 4
    hidden_dim = 32
    batch = 2

    root = jax.random.PRNGKey(0)
    k_params, k_obs, k_act = jax.random.split(root, 3)
    params = init_params(k_params, obs_shape, feature_dim, action_dim, hidden_dim)
    weights, cfg = prepare_params(params, obs_shape)      # one-time weight packing
    critic_forward = make_critic_forward(cfg)

    obs = jax.random.uniform(k_obs, (batch,) + obs_shape, minval=0.0, maxval=255.0)
    action = jax.random.uniform(k_act, (batch, action_dim), minval=-1.0, maxval=1.0)

    q1, q2 = critic_forward(weights, obs, action)
    jax.block_until_ready((q1, q2))

    assert q1.shape == (batch, 1) and q2.shape == (batch, 1)
    assert q1.dtype == jnp.float32 and q2.dtype == jnp.float32

    # sanity check against a pure-JAX reference of the PyTorch module
    r1, r2 = _reference_forward(params, obs, action)
    assert bool(jnp.allclose(q1, r1, atol=2e-2, rtol=2e-2)), (q1, r1)
    assert bool(jnp.allclose(q2, r2, atol=2e-2, rtol=2e-2)), (q2, r2)

    print("KERNEL_OK")
</pallas_src>

<mosaic_0001>
module attributes {stable_mosaic.version = 11 : i64} {
  func.func @kernel(%arg0: i32, %arg1: memref<16x252xbf16, #tpu.memory_space<vmem>>, %arg2: memref<2x4xbf16, #tpu.memory_space<vmem>>, %arg3: memref<252x224xbf16, #tpu.memory_space<vmem>>, %arg4: memref<3x224x160xbf16, #tpu.memory_space<vmem>>, %arg5: memref<3x160x96xbf16, #tpu.memory_space<vmem>>, %arg6: memref<3x96x32xbf16, #tpu.memory_space<vmem>>, %arg7: memref<1x32x32xbf16, #tpu.memory_space<vmem>>, %arg8: memref<32x64xbf16, #tpu.memory_space<vmem>>, %arg9: memref<4x64xbf16, #tpu.memory_space<vmem>>, %arg10: memref<64x64xbf16, #tpu.memory_space<vmem>>, %arg11: memref<64x2xbf16, #tpu.memory_space<vmem>>, %arg12: memref<1x1536xf32, #tpu.memory_space<vmem>>, %arg13: memref<2x2xf32, #tpu.memory_space<vmem>>) attributes {dimension_semantics = [#tpu.dimension_semantics<arbitrary>], iteration_bounds = array<i64: 1>, scalar_prefetch = 0 : i64, scratch_operands = 0 : i64, tpu.core_type = #tpu.core_type<tc>, window_params = [{pipeline_mode = #tpu.pipeline_mode<synchronous>, transform_indices = @transform_0, window_bounds = array<i64: 16, 252>}, {pipeline_mode = #tpu.pipeline_mode<synchronous>, transform_indices = @transform_1, window_bounds = array<i64: 2, 4>}, {pipeline_mode = #tpu.pipeline_mode<synchronous>, transform_indices = @transform_2, window_bounds = array<i64: 252, 224>}, {pipeline_mode = #tpu.pipeline_mode<synchronous>, transform_indices = @transform_3, window_bounds = array<i64: 3, 224, 160>}, {pipeline_mode = #tpu.pipeline_mode<synchronous>, transform_indices = @transform_4, window_bounds = array<i64: 3, 160, 96>}, {pipeline_mode = #tpu.pipeline_mode<synchronous>, transform_indices = @transform_5, window_bounds = array<i64: 3, 96, 32>}, {pipeline_mode = #tpu.pipeline_mode<synchronous>, transform_indices = @transform_6, window_bounds = array<i64: 1, 32, 32>}, {pipeline_mode = #tpu.pipeline_mode<synchronous>, transform_indices = @transform_7, window_bounds = array<i64: 32, 64>}, {pipeline_mode = #tpu.pipeline_mode<synchronous>, transform_indices = @transform_8, window_bounds = array<i64: 4, 64>}, {pipeline_mode = #tpu.pipeline_mode<synchronous>, transform_indices = @transform_9, window_bounds = array<i64: 64, 64>}, {pipeline_mode = #tpu.pipeline_mode<synchronous>, transform_indices = @transform_10, window_bounds = array<i64: 64, 2>}, {pipeline_mode = #tpu.pipeline_mode<synchronous>, transform_indices = @transform_11, window_bounds = array<i64: 1, 1536>}, {pipeline_mode = #tpu.pipeline_mode<synchronous>, transform_indices = @transform_12, window_bounds = array<i64: 2, 2>}]} {
    %c0 = arith.constant 0 : index
    %c0_0 = arith.constant 0 : index
    %0 = vector.load %arg1[%c0, %c0_0] : memref<16x252xbf16, #tpu.memory_space<vmem>>, vector<16x252xbf16>
    %c0_1 = arith.constant 0 : index
    %c0_2 = arith.constant 0 : index
    %1 = vector.load %arg3[%c0_1, %c0_2] : memref<252x224xbf16, #tpu.memory_space<vmem>>, vector<252x224xbf16>
    %cst = arith.constant dense<0.000000e+00> : vector<16x224xf32>
    %2 = tpu.matmul %0, %1, %cst {dimension_numbers = #tpu.dot_dimension_numbers<[1], [0], [0], [1], [0, 0, 1, 1], [], []>} : vector<16x252xbf16>, vector<252x224xbf16>, vector<16x224xf32> -> vector<16x224xf32>
    %c0_3 = arith.constant 0 : index
    %c0_4 = arith.constant 0 : index
    %3 = vector.load %arg12[%c0_3, %c0_4] : memref<1x1536xf32, #tpu.memory_space<vmem>>, vector<1x224xf32>
    %4 = vector.broadcast %3 : vector<1x224xf32> to vector<16x224xf32>
    %5 = arith.addf %2, %4 : vector<16x224xf32>
    %cst_5 = arith.constant 0.000000e+00 : f32
    %6 = vector.broadcast %cst_5 : f32 to vector<16x224xf32>
    %7 = arith.maximumf %5, %6 : vector<16x224xf32>
    %8 = vector.extract_strided_slice %7 {offsets = [0, 0], sizes = [8, 224], strides = [1, 1]} : vector<16x224xf32> to vector<8x224xf32>
    %9 = arith.truncf %8 : vector<8x224xf32> to vector<8x224xbf16>
    %c0_6 = arith.constant 0 : index
    %c256 = arith.constant 256 : index
    %10 = vector.load %arg12[%c0_6, %c256] : memref<1x1536xf32, #tpu.memory_space<vmem>>, vector<1x160xf32>
    %11 = vector.extract_strided_slice %9 {offsets = [0, 0], sizes = [5, 224], strides = [1, 1]} : vector<8x224xbf16> to vector<5x224xbf16>
    %c0_7 = arith.constant 0 : index
    %c0_8 = arith.constant 0 : index
    %c0_9 = arith.constant 0 : index
    %12 = vector.load %arg4[%c0_7, %c0_8, %c0_9] : memref<3x224x160xbf16, #tpu.memory_space<vmem>>, vector<1x224x160xbf16>
    %13 = vector.shape_cast %12 : vector<1x224x160xbf16> to vector<224x160xbf16>
    %cst_10 = arith.constant dense<0.000000e+00> : vector<5x160xf32>
    %14 = tpu.matmul %11, %13, %cst_10 {dimension_numbers = #tpu.dot_dimension_numbers<[1], [0], [0], [1], [0, 0, 1, 1], [], []>} : vector<5x224xbf16>, vector<224x160xbf16>, vector<5x160xf32> -> vector<5x160xf32>
    %15 = vector.broadcast %10 : vector<1x160xf32> to vector<5x160xf32>
    %16 = arith.addf %15, %14 : vector<5x160xf32>
    %17 = vector.extract_strided_slice %9 {offsets = [1, 0], sizes = [5, 224], strides = [1, 1]} : vector<8x224xbf16> to vector<5x224xbf16>
    %c1 = arith.constant 1 : index
    %c0_11 = arith.constant 0 : index
    %c0_12 = arith.constant 0 : index
    %18 = vector.load %arg4[%c1, %c0_11, %c0_12] : memref<3x224x160xbf16, #tpu.memory_space<vmem>>, vector<1x224x160xbf16>
    %19 = vector.shape_cast %18 : vector<1x224x160xbf16> to vector<224x160xbf16>
    %cst_13 = arith.constant dense<0.000000e+00> : vector<5x160xf32>
    %20 = tpu.matmul %17, %19, %cst_13 {dimension_numbers = #tpu.dot_dimension_numbers<[1], [0], [0], [1], [0, 0, 1, 1], [], []>} : vector<5x224xbf16>, vector<224x160xbf16>, vector<5x160xf32> -> vector<5x160xf32>
    %21 = arith.addf %16, %20 : vector<5x160xf32>
    %22 = vector.extract_strided_slice %9 {offsets = [2, 0], sizes = [5, 224], strides = [1, 1]} : vector<8x224xbf16> to vector<5x224xbf16>
    %c2 = arith.constant 2 : index
    %c0_14 = arith.constant 0 : index
    %c0_15 = arith.constant 0 : index
    %23 = vector.load %arg4[%c2, %c0_14, %c0_15] : memref<3x224x160xbf16, #tpu.memory_space<vmem>>, vector<1x224x160xbf16>
    %24 = vector.shape_cast %23 : vector<1x224x160xbf16> to vector<224x160xbf16>
    %cst_16 = arith.constant dense<0.000000e+00> : vector<5x160xf32>
    %25 = tpu.matmul %22, %24, %cst_16 {dimension_numbers = #tpu.dot_dimension_numbers<[1], [0], [0], [1], [0, 0, 1, 1], [], []>} : vector<5x224xbf16>, vector<224x160xbf16>, vector<5x160xf32> -> vector<5x160xf32>
    %26 = arith.addf %21, %25 : vector<5x160xf32>
    %cst_17 = arith.constant 0.000000e+00 : f32
    %27 = vector.broadcast %cst_17 : f32 to vector<5x160xf32>
    %28 = arith.maximumf %26, %27 : vector<5x160xf32>
    %29 = arith.truncf %28 : vector<5x160xf32> to vector<5x160xbf16>
    %c0_18 = arith.constant 0 : index
    %c512 = arith.constant 512 : index
    %30 = vector.load %arg12[%c0_18, %c512] : memref<1x1536xf32, #tpu.memory_space<vmem>>, vector<1x96xf32>
    %31 = vector.extract_strided_slice %29 {offsets = [0, 0], sizes = [3, 160], strides = [1, 1]} : vector<5x160xbf16> to vector<3x160xbf16>
    %c0_19 = arith.constant 0 : index
    %c0_20 = arith.constant 0 : index
    %c0_21 = arith.constant 0 : index
    %32 = vector.load %arg5[%c0_19, %c0_20, %c0_21] : memref<3x160x96xbf16, #tpu.memory_space<vmem>>, vector<1x160x96xbf16>
    %33 = vector.shape_cast %32 : vector<1x160x96xbf16> to vector<160x96xbf16>
    %cst_22 = arith.constant dense<0.000000e+00> : vector<3x96xf32>
    %34 = tpu.matmul %31, %33, %cst_22 {dimension_numbers = #tpu.dot_dimension_numbers<[1], [0], [0], [1], [0, 0, 1, 1], [], []>} : vector<3x160xbf16>, vector<160x96xbf16>, vector<3x96xf32> -> vector<3x96xf32>
    %35 = vector.broadcast %30 : vector<1x96xf32> to vector<3x96xf32>
    %36 = arith.addf %35, %34 : vector<3x96xf32>
    %37 = vector.extract_strided_slice %29 {offsets = [1, 0], sizes = [3, 160], strides = [1, 1]} : vector<5x160xbf16> to vector<3x160xbf16>
    %c1_23 = arith.constant 1 : index
    %c0_24 = arith.constant 0 : index
    %c0_25 = arith.constant 0 : index
    %38 = vector.load %arg5[%c1_23, %c0_24, %c0_25] : memref<3x160x96xbf16, #tpu.memory_space<vmem>>, vector<1x160x96xbf16>
    %39 = vector.shape_cast %38 : vector<1x160x96xbf16> to vector<160x96xbf16>
    %cst_26 = arith.constant dense<0.000000e+00> : vector<3x96xf32>
    %40 = tpu.matmul %37, %39, %cst_26 {dimension_numbers = #tpu.dot_dimension_numbers<[1], [0], [0], [1], [0, 0, 1, 1], [], []>} : vector<3x160xbf16>, vector<160x96xbf16>, vector<3x96xf32> -> vector<3x96xf32>
    %41 = arith.addf %36, %40 : vector<3x96xf32>
    %42 = vector.extract_strided_slice %29 {offsets = [2, 0], sizes = [3, 160], strides = [1, 1]} : vector<5x160xbf16> to vector<3x160xbf16>
    %c2_27 = arith.constant 2 : index
    %c0_28 = arith.constant 0 : index
    %c0_29 = arith.constant 0 : index
    %43 = vector.load %arg5[%c2_27, %c0_28, %c0_29] : memref<3x160x96xbf16, #tpu.memory_space<vmem>>, vector<1x160x96xbf16>
    %44 = vector.shape_cast %43 : vector<1x160x96xbf16> to vector<160x96xbf16>
    %cst_30 = arith.constant dense<0.000000e+00> : vector<3x96xf32>
    %45 = tpu.matmul %42, %44, %cst_30 {dimension_numbers = #tpu.dot_dimension_numbers<[1], [0], [0], [1], [0, 0, 1, 1], [], []>} : vector<3x160xbf16>, vector<160x96xbf16>, vector<3x96xf32> -> vector<3x96xf32>
    %46 = arith.addf %41, %45 : vector<3x96xf32>
    %cst_31 = arith.constant 0.000000e+00 : f32
    %47 = vector.broadcast %cst_31 : f32 to vector<3x96xf32>
    %48 = arith.maximumf %46, %47 : vector<3x96xf32>
    %49 = arith.truncf %48 : vector<3x96xf32> to vector<3x96xbf16>
    %c0_32 = arith.constant 0 : index
    %c640 = arith.constant 640 : index
    %50 = vector.load %arg12[%c0_32, %c640] : memref<1x1536xf32, #tpu.memory_space<vmem>>, vector<1x32xf32>
    %51 = vector.extract_strided_slice %49 {offsets = [0, 0], sizes = [1, 96], strides = [1, 1]} : vector<3x96xbf16> to vector<1x96xbf16>
    %c0_33 = arith.constant 0 : index
    %c0_34 = arith.constant 0 : index
    %c0_35 = arith.constant 0 : index
    %52 = vector.load %arg6[%c0_33, %c0_34, %c0_35] : memref<3x96x32xbf16, #tpu.memory_space<vmem>>, vector<1x96x32xbf16>
    %53 = vector.shape_cast %52 : vector<1x96x32xbf16> to vector<96x32xbf16>
    %cst_36 = arith.constant dense<0.000000e+00> : vector<1x32xf32>
    %54 = tpu.matmul %51, %53, %cst_36 {dimension_numbers = #tpu.dot_dimension_numbers<[1], [0], [0], [1], [0, 0, 1, 1], [], []>} : vector<1x96xbf16>, vector<96x32xbf16>, vector<1x32xf32> -> vector<1x32xf32>
    %55 = arith.addf %50, %54 : vector<1x32xf32>
    %56 = vector.extract_strided_slice %49 {offsets = [1, 0], sizes = [1, 96], strides = [1, 1]} : vector<3x96xbf16> to vector<1x96xbf16>
    %c1_37 = arith.constant 1 : index
    %c0_38 = arith.constant 0 : index
    %c0_39 = arith.constant 0 : index
    %57 = vector.load %arg6[%c1_37, %c0_38, %c0_39] : memref<3x96x32xbf16, #tpu.memory_space<vmem>>, vector<1x96x32xbf16>
    %58 = vector.shape_cast %57 : vector<1x96x32xbf16> to vector<96x32xbf16>
    %cst_40 = arith.constant dense<0.000000e+00> : vector<1x32xf32>
    %59 = tpu.matmul %56, %58, %cst_40 {dimension_numbers = #tpu.dot_dimension_numbers<[1], [0], [0], [1], [0, 0, 1, 1], [], []>} : vector<1x96xbf16>, vector<96x32xbf16>, vector<1x32xf32> -> vector<1x32xf32>
    %60 = arith.addf %55, %59 : vector<1x32xf32>
    %61 = vector.extract_strided_slice %49 {offsets = [2, 0], sizes = [1, 96], strides = [1, 1]} : vector<3x96xbf16> to vector<1x96xbf16>
    %c2_41 = arith.constant 2 : index
    %c0_42 = arith.constant 0 : index
    %c0_43 = arith.constant 0 : index
    %62 = vector.load %arg6[%c2_41, %c0_42, %c0_43] : memref<3x96x32xbf16, #tpu.memory_space<vmem>>, vector<1x96x32xbf16>
    %63 = vector.shape_cast %62 : vector<1x96x32xbf16> to vector<96x32xbf16>
    %cst_44 = arith.constant dense<0.000000e+00> : vector<1x32xf32>
    %64 = tpu.matmul %61, %63, %cst_44 {dimension_numbers = #tpu.dot_dimension_numbers<[1], [0], [0], [1], [0, 0, 1, 1], [], []>} : vector<1x96xbf16>, vector<96x32xbf16>, vector<1x32xf32> -> vector<1x32xf32>
    %65 = arith.addf %60, %64 : vector<1x32xf32>
    %cst_45 = arith.constant 0.000000e+00 : f32
    %66 = vector.broadcast %cst_45 : f32 to vector<1x32xf32>
    %67 = arith.maximumf %65, %66 : vector<1x32xf32>
    %68 = arith.truncf %67 : vector<1x32xf32> to vector<1x32xbf16>
    %c0_46 = arith.constant 0 : index
    %c768 = arith.constant 768 : index
    %69 = vector.load %arg12[%c0_46, %c768] : memref<1x1536xf32, #tpu.memory_space<vmem>>, vector<1x32xf32>
    %c0_47 = arith.constant 0 : index
    %c0_48 = arith.constant 0 : index
    %c0_49 = arith.constant 0 : index
    %70 = vector.load %arg7[%c0_47, %c0_48, %c0_49] : memref<1x32x32xbf16, #tpu.memory_space<vmem>>, vector<1x32x32xbf16>
    %71 = vector.shape_cast %70 : vector<1x32x32xbf16> to vector<32x32xbf16>
    %cst_50 = arith.constant dense<0.000000e+00> : vector<1x32xf32>
    %72 = tpu.matmul %68, %71, %cst_50 {dimension_numbers = #tpu.dot_dimension_numbers<[1], [0], [0], [1], [0, 0, 1, 1], [], []>} : vector<1x32xbf16>, vector<32x32xbf16>, vector<1x32xf32> -> vector<1x32xf32>
    %73 = arith.addf %69, %72 : vector<1x32xf32>
    %74 = vector.extract_strided_slice %7 {offsets = [8, 0], sizes = [8, 224], strides = [1, 1]} : vector<16x224xf32> to vector<8x224xf32>
    %75 = arith.truncf %74 : vector<8x224xf32> to vector<8x224xbf16>
    %c0_51 = arith.constant 0 : index
    %c256_52 = arith.constant 256 : index
    %76 = vector.load %arg12[%c0_51, %c256_52] : memref<1x1536xf32, #tpu.memory_space<vmem>>, vector<1x160xf32>
    %77 = vector.extract_strided_slice %75 {offsets = [0, 0], sizes = [5, 224], strides = [1, 1]} : vector<8x224xbf16> to vector<5x224xbf16>
    %c0_53 = arith.constant 0 : index
    %c0_54 = arith.constant 0 : index
    %c0_55 = arith.constant 0 : index
    %78 = vector.load %arg4[%c0_53, %c0_54, %c0_55] : memref<3x224x160xbf16, #tpu.memory_space<vmem>>, vector<1x224x160xbf16>
    %79 = vector.shape_cast %78 : vector<1x224x160xbf16> to vector<224x160xbf16>
    %cst_56 = arith.constant dense<0.000000e+00> : vector<5x160xf32>
    %80 = tpu.matmul %77, %79, %cst_56 {dimension_numbers = #tpu.dot_dimension_numbers<[1], [0], [0], [1], [0, 0, 1, 1], [], []>} : vector<5x224xbf16>, vector<224x160xbf16>, vector<5x160xf32> -> vector<5x160xf32>
    %81 = vector.broadcast %76 : vector<1x160xf32> to vector<5x160xf32>
    %82 = arith.addf %81, %80 : vector<5x160xf32>
    %83 = vector.extract_strided_slice %75 {offsets = [1, 0], sizes = [5, 224], strides = [1, 1]} : vector<8x224xbf16> to vector<5x224xbf16>
    %c1_57 = arith.constant 1 : index
    %c0_58 = arith.constant 0 : index
    %c0_59 = arith.constant 0 : index
    %84 = vector.load %arg4[%c1_57, %c0_58, %c0_59] : memref<3x224x160xbf16, #tpu.memory_space<vmem>>, vector<1x224x160xbf16>
    %85 = vector.shape_cast %84 : vector<1x224x160xbf16> to vector<224x160xbf16>
    %cst_60 = arith.constant dense<0.000000e+00> : vector<5x160xf32>
    %86 = tpu.matmul %83, %85, %cst_60 {dimension_numbers = #tpu.dot_dimension_numbers<[1], [0], [0], [1], [0, 0, 1, 1], [], []>} : vector<5x224xbf16>, vector<224x160xbf16>, vector<5x160xf32> -> vector<5x160xf32>
    %87 = arith.addf %82, %86 : vector<5x160xf32>
    %88 = vector.extract_strided_slice %75 {offsets = [2, 0], sizes = [5, 224], strides = [1, 1]} : vector<8x224xbf16> to vector<5x224xbf16>
    %c2_61 = arith.constant 2 : index
    %c0_62 = arith.constant 0 : index
    %c0_63 = arith.constant 0 : index
    %89 = vector.load %arg4[%c2_61, %c0_62, %c0_63] : memref<3x224x160xbf16, #tpu.memory_space<vmem>>, vector<1x224x160xbf16>
    %90 = vector.shape_cast %89 : vector<1x224x160xbf16> to vector<224x160xbf16>
    %cst_64 = arith.constant dense<0.000000e+00> : vector<5x160xf32>
    %91 = tpu.matmul %88, %90, %cst_64 {dimension_numbers = #tpu.dot_dimension_numbers<[1], [0], [0], [1], [0, 0, 1, 1], [], []>} : vector<5x224xbf16>, vector<224x160xbf16>, vector<5x160xf32> -> vector<5x160xf32>
    %92 = arith.addf %87, %91 : vector<5x160xf32>
    %cst_65 = arith.constant 0.000000e+00 : f32
    %93 = vector.broadcast %cst_65 : f32 to vector<5x160xf32>
    %94 = arith.maximumf %92, %93 : vector<5x160xf32>
    %95 = arith.truncf %94 : vector<5x160xf32> to vector<5x160xbf16>
    %c0_66 = arith.constant 0 : index
    %c512_67 = arith.constant 512 : index
    %96 = vector.load %arg12[%c0_66, %c512_67] : memref<1x1536xf32, #tpu.memory_space<vmem>>, vector<1x96xf32>
    %97 = vector.extract_strided_slice %95 {offsets = [0, 0], sizes = [3, 160], strides = [1, 1]} : vector<5x160xbf16> to vector<3x160xbf16>
    %c0_68 = arith.constant 0 : index
    %c0_69 = arith.constant 0 : index
    %c0_70 = arith.constant 0 : index
    %98 = vector.load %arg5[%c0_68, %c0_69, %c0_70] : memref<3x160x96xbf16, #tpu.memory_space<vmem>>, vector<1x160x96xbf16>
    %99 = vector.shape_cast %98 : vector<1x160x96xbf16> to vector<160x96xbf16>
    %cst_71 = arith.constant dense<0.000000e+00> : vector<3x96xf32>
    %100 = tpu.matmul %97, %99, %cst_71 {dimension_numbers = #tpu.dot_dimension_numbers<[1], [0], [0], [1], [0, 0, 1, 1], [], []>} : vector<3x160xbf16>, vector<160x96xbf16>, vector<3x96xf32> -> vector<3x96xf32>
    %101 = vector.broadcast %96 : vector<1x96xf32> to vector<3x96xf32>
    %102 = arith.addf %101, %100 : vector<3x96xf32>
    %103 = vector.extract_strided_slice %95 {offsets = [1, 0], sizes = [3, 160], strides = [1, 1]} : vector<5x160xbf16> to vector<3x160xbf16>
    %c1_72 = arith.constant 1 : index
    %c0_73 = arith.constant 0 : index
    %c0_74 = arith.constant 0 : index
    %104 = vector.load %arg5[%c1_72, %c0_73, %c0_74] : memref<3x160x96xbf16, #tpu.memory_space<vmem>>, vector<1x160x96xbf16>
    %105 = vector.shape_cast %104 : vector<1x160x96xbf16> to vector<160x96xbf16>
    %cst_75 = arith.constant dense<0.000000e+00> : vector<3x96xf32>
    %106 = tpu.matmul %103, %105, %cst_75 {dimension_numbers = #tpu.dot_dimension_numbers<[1], [0], [0], [1], [0, 0, 1, 1], [], []>} : vector<3x160xbf16>, vector<160x96xbf16>, vector<3x96xf32> -> vector<3x96xf32>
    %107 = arith.addf %102, %106 : vector<3x96xf32>
    %108 = vector.extract_strided_slice %95 {offsets = [2, 0], sizes = [3, 160], strides = [1, 1]} : vector<5x160xbf16> to vector<3x160xbf16>
    %c2_76 = arith.constant 2 : index
    %c0_77 = arith.constant 0 : index
    %c0_78 = arith.constant 0 : index
    %109 = vector.load %arg5[%c2_76, %c0_77, %c0_78] : memref<3x160x96xbf16, #tpu.memory_space<vmem>>, vector<1x160x96xbf16>
    %110 = vector.shape_cast %109 : vector<1x160x96xbf16> to vector<160x96xbf16>
    %cst_79 = arith.constant dense<0.000000e+00> : vector<3x96xf32>
    %111 = tpu.matmul %108, %110, %cst_79 {dimension_numbers = #tpu.dot_dimension_numbers<[1], [0], [0], [1], [0, 0, 1, 1], [], []>} : vector<3x160xbf16>, vector<160x96xbf16>, vector<3x96xf32> -> vector<3x96xf32>
    %112 = arith.addf %107, %111 : vector<3x96xf32>
    %cst_80 = arith.constant 0.000000e+00 : f32
    %113 = vector.broadcast %cst_80 : f32 to vector<3x96xf32>
    %114 = arith.maximumf %112, %113 : vector<3x96xf32>
    %115 = arith.truncf %114 : vector<3x96xf32> to vector<3x96xbf16>
    %c0_81 = arith.constant 0 : index
    %c640_82 = arith.constant 640 : index
    %116 = vector.load %arg12[%c0_81, %c640_82] : memref<1x1536xf32, #tpu.memory_space<vmem>>, vector<1x32xf32>
    %117 = vector.extract_strided_slice %115 {offsets = [0, 0], sizes = [1, 96], strides = [1, 1]} : vector<3x96xbf16> to vector<1x96xbf16>
    %c0_83 = arith.constant 0 : index
    %c0_84 = arith.constant 0 : index
    %c0_85 = arith.constant 0 : index
    %118 = vector.load %arg6[%c0_83, %c0_84, %c0_85] : memref<3x96x32xbf16, #tpu.memory_space<vmem>>, vector<1x96x32xbf16>
    %119 = vector.shape_cast %118 : vector<1x96x32xbf16> to vector<96x32xbf16>
    %cst_86 = arith.constant dense<0.000000e+00> : vector<1x32xf32>
    %120 = tpu.matmul %117, %119, %cst_86 {dimension_numbers = #tpu.dot_dimension_numbers<[1], [0], [0], [1], [0, 0, 1, 1], [], []>} : vector<1x96xbf16>, vector<96x32xbf16>, vector<1x32xf32> -> vector<1x32xf32>
    %121 = arith.addf %116, %120 : vector<1x32xf32>
    %122 = vector.extract_strided_slice %115 {offsets = [1, 0], sizes = [1, 96], strides = [1, 1]} : vector<3x96xbf16> to vector<1x96xbf16>
    %c1_87 = arith.constant 1 : index
    %c0_88 = arith.constant 0 : index
    %c0_89 = arith.constant 0 : index
    %123 = vector.load %arg6[%c1_87, %c0_88, %c0_89] : memref<3x96x32xbf16, #tpu.memory_space<vmem>>, vector<1x96x32xbf16>
    %124 = vector.shape_cast %123 : vector<1x96x32xbf16> to vector<96x32xbf16>
    %cst_90 = arith.constant dense<0.000000e+00> : vector<1x32xf32>
    %125 = tpu.matmul %122, %124, %cst_90 {dimension_numbers = #tpu.dot_dimension_numbers<[1], [0], [0], [1], [0, 0, 1, 1], [], []>} : vector<1x96xbf16>, vector<96x32xbf16>, vector<1x32xf32> -> vector<1x32xf32>
    %126 = arith.addf %121, %125 : vector<1x32xf32>
    %127 = vector.extract_strided_slice %115 {offsets = [2, 0], sizes = [1, 96], strides = [1, 1]} : vector<3x96xbf16> to vector<1x96xbf16>
    %c2_91 = arith.constant 2 : index
    %c0_92 = arith.constant 0 : index
    %c0_93 = arith.constant 0 : index
    %128 = vector.load %arg6[%c2_91, %c0_92, %c0_93] : memref<3x96x32xbf16, #tpu.memory_space<vmem>>, vector<1x96x32xbf16>
    %129 = vector.shape_cast %128 : vector<1x96x32xbf16> to vector<96x32xbf16>
    %cst_94 = arith.constant dense<0.000000e+00> : vector<1x32xf32>
    %130 = tpu.matmul %127, %129, %cst_94 {dimension_numbers = #tpu.dot_dimension_numbers<[1], [0], [0], [1], [0, 0, 1, 1], [], []>} : vector<1x96xbf16>, vector<96x32xbf16>, vector<1x32xf32> -> vector<1x32xf32>
    %131 = arith.addf %126, %130 : vector<1x32xf32>
    %cst_95 = arith.constant 0.000000e+00 : f32
    %132 = vector.broadcast %cst_95 : f32 to vector<1x32xf32>
    %133 = arith.maximumf %131, %132 : vector<1x32xf32>
    %134 = arith.truncf %133 : vector<1x32xf32> to vector<1x32xbf16>
    %c0_96 = arith.constant 0 : index
    %c768_97 = arith.constant 768 : index
    %135 = vector.load %arg12[%c0_96, %c768_97] : memref<1x1536xf32, #tpu.memory_space<vmem>>, vector<1x32xf32>
    %c0_98 = arith.constant 0 : index
    %c0_99 = arith.constant 0 : index
    %c0_100 = arith.constant 0 : index
    %136 = vector.load %arg7[%c0_98, %c0_99, %c0_100] : memref<1x32x32xbf16, #tpu.memory_space<vmem>>, vector<1x32x32xbf16>
    %137 = vector.shape_cast %136 : vector<1x32x32xbf16> to vector<32x32xbf16>
    %cst_101 = arith.constant dense<0.000000e+00> : vector<1x32xf32>
    %138 = tpu.matmul %134, %137, %cst_101 {dimension_numbers = #tpu.dot_dimension_numbers<[1], [0], [0], [1], [0, 0, 1, 1], [], []>} : vector<1x32xbf16>, vector<32x32xbf16>, vector<1x32xf32> -> vector<1x32xf32>
    %139 = arith.addf %135, %138 : vector<1x32xf32>
    %140 = tpu.concatenate %73, %139 in 0 : vector<1x32xf32>, vector<1x32xf32> -> vector<2x32xf32>
    %cst_102 = arith.constant dense<0.000000e+00> : vector<2xf32>
    %141 = vector.multi_reduction <add>, %140, %cst_102 [1] : vector<2x32xf32> to vector<2xf32>
    %142 = vector.shape_cast %141 : vector<2xf32> to vector<2x1xf32>
    %cst_103 = arith.constant 3.200000e+01 : f32
    %143 = vector.broadcast %cst_103 : f32 to vector<2x1xf32>
    %144 = arith.divf %142, %143 : vector<2x1xf32>
    %145 = vector.broadcast %144 : vector<2x1xf32> to vector<2x32xf32>
    %146 = arith.subf %140, %145 : vector<2x32xf32>
    %147 = arith.mulf %146, %146 : vector<2x32xf32>
    %cst_104 = arith.constant dense<0.000000e+00> : vector<2xf32>
    %148 = vector.multi_reduction <add>, %147, %cst_104 [1] : vector<2x32xf32> to vector<2xf32>
    %149 = vector.shape_cast %148 : vector<2xf32> to vector<2x1xf32>
    %cst_105 = arith.constant 3.200000e+01 : f32
    %150 = vector.broadcast %cst_105 : f32 to vector<2x1xf32>
    %151 = arith.divf %149, %150 : vector<2x1xf32>
    %152 = vector.broadcast %144 : vector<2x1xf32> to vector<2x32xf32>
    %153 = arith.subf %140, %152 : vector<2x32xf32>
    %cst_106 = arith.constant 9.99999974E-6 : f32
    %154 = vector.broadcast %cst_106 : f32 to vector<2x1xf32>
    %155 = arith.addf %151, %154 : vector<2x1xf32>
    %156 = math.rsqrt %155 : vector<2x1xf32>
    %157 = vector.broadcast %156 : vector<2x1xf32> to vector<2x32xf32>
    %158 = arith.mulf %153, %157 : vector<2x32xf32>
    %c0_107 = arith.constant 0 : index
    %c896 = arith.constant 896 : index
    %159 = vector.load %arg12[%c0_107, %c896] : memref<1x1536xf32, #tpu.memory_space<vmem>>, vector<1x32xf32>
    %160 = vector.broadcast %159 : vector<1x32xf32> to vector<2x32xf32>
    %161 = arith.mulf %158, %160 : vector<2x32xf32>
    %c0_108 = arith.constant 0 : index
    %c1024 = arith.constant 1024 : index
    %162 = vector.load %arg12[%c0_108, %c1024] : memref<1x1536xf32, #tpu.memory_space<vmem>>, vector<1x32xf32>
    %163 = vector.broadcast %162 : vector<1x32xf32> to vector<2x32xf32>
    %164 = arith.addf %161, %163 : vector<2x32xf32>
    %165 = math.tanh %164 : vector<2x32xf32>
    %166 = arith.truncf %165 : vector<2x32xf32> to vector<2x32xbf16>
    %c0_109 = arith.constant 0 : index
    %c0_110 = arith.constant 0 : index
    %167 = vector.load %arg8[%c0_109, %c0_110] : memref<32x64xbf16, #tpu.memory_space<vmem>>, vector<32x64xbf16>
    %cst_111 = arith.constant dense<0.000000e+00> : vector<2x64xf32>
    %168 = tpu.matmul %166, %167, %cst_111 {dimension_numbers = #tpu.dot_dimension_numbers<[1], [0], [0], [1], [0, 0, 1, 1], [], []>} : vector<2x32xbf16>, vector<32x64xbf16>, vector<2x64xf32> -> vector<2x64xf32>
    %c0_112 = arith.constant 0 : index
    %c0_113 = arith.constant 0 : index
    %169 = vector.load %arg2[%c0_112, %c0_113] : memref<2x4xbf16, #tpu.memory_space<vmem>>, vector<2x4xbf16>
    %c0_114 = arith.constant 0 : index
    %c0_115 = arith.constant 0 : index
    %170 = vector.load %arg9[%c0_114, %c0_115] : memref<4x64xbf16, #tpu.memory_space<vmem>>, vector<4x64xbf16>
    %cst_116 = arith.constant dense<0.000000e+00> : vector<2x64xf32>
    %171 = tpu.matmul %169, %170, %cst_116 {dimension_numbers = #tpu.dot_dimension_numbers<[1], [0], [0], [1], [0, 0, 1, 1], [], []>} : vector<2x4xbf16>, vector<4x64xbf16>, vector<2x64xf32> -> vector<2x64xf32>
    %172 = arith.addf %168, %171 : vector<2x64xf32>
    %c0_117 = arith.constant 0 : index
    %c1152 = arith.constant 1152 : index
    %173 = vector.load %arg12[%c0_117, %c1152] : memref<1x1536xf32, #tpu.memory_space<vmem>>, vector<1x64xf32>
    %174 = vector.broadcast %173 : vector<1x64xf32> to vector<2x64xf32>
    %175 = arith.addf %172, %174 : vector<2x64xf32>
    %cst_118 = arith.constant 0.000000e+00 : f32
    %176 = vector.broadcast %cst_118 : f32 to vector<2x64xf32>
    %177 = arith.maximumf %175, %176 : vector<2x64xf32>
    %178 = arith.truncf %177 : vector<2x64xf32> to vector<2x64xbf16>
    %c0_119 = arith.constant 0 : index
    %c0_120 = arith.constant 0 : index
    %179 = vector.load %arg10[%c0_119, %c0_120] : memref<64x64xbf16, #tpu.memory_space<vmem>>, vector<64x64xbf16>
    %cst_121 = arith.constant dense<0.000000e+00> : vector<2x64xf32>
    %180 = tpu.matmul %178, %179, %cst_121 {dimension_numbers = #tpu.dot_dimension_numbers<[1], [0], [0], [1], [0, 0, 1, 1], [], []>} : vector<2x64xbf16>, vector<64x64xbf16>, vector<2x64xf32> -> vector<2x64xf32>
    %c0_122 = arith.constant 0 : index
    %c1280 = arith.constant 1280 : index
    %181 = vector.load %arg12[%c0_122, %c1280] : memref<1x1536xf32, #tpu.memory_space<vmem>>, vector<1x64xf32>
    %182 = vector.broadcast %181 : vector<1x64xf32> to vector<2x64xf32>
    %183 = arith.addf %180, %182 : vector<2x64xf32>
    %cst_123 = arith.constant 0.000000e+00 : f32
    %184 = vector.broadcast %cst_123 : f32 to vector<2x64xf32>
    %185 = arith.maximumf %183, %184 : vector<2x64xf32>
    %186 = arith.truncf %185 : vector<2x64xf32> to vector<2x64xbf16>
    %c0_124 = arith.constant 0 : index
    %c0_125 = arith.constant 0 : index
    %187 = vector.load %arg11[%c0_124, %c0_125] : memref<64x2xbf16, #tpu.memory_space<vmem>>, vector<64x2xbf16>
    %cst_126 = arith.constant dense<0.000000e+00> : vector<2x2xf32>
    %188 = tpu.matmul %186, %187, %cst_126 {dimension_numbers = #tpu.dot_dimension_numbers<[1], [0], [0], [1], [0, 0, 1, 1], [], []>} : vector<2x64xbf16>, vector<64x2xbf16>, vector<2x2xf32> -> vector<2x2xf32>
    %c0_127 = arith.constant 0 : index
    %c1408 = arith.constant 1408 : index
    %189 = vector.load %arg12[%c0_127, %c1408] : memref<1x1536xf32, #tpu.memory_space<vmem>>, vector<1x2xf32>
    %190 = vector.broadcast %189 : vector<1x2xf32> to vector<2x2xf32>
    %191 = arith.addf %188, %190 : vector<2x2xf32>
    %c0_128 = arith.constant 0 : index
    %c0_129 = arith.constant 0 : index
    %192 = vector.load %arg13[%c0_128, %c0_129] : memref<2x2xf32, #tpu.memory_space<vmem>>, vector<2x2xf32>
    tpu.vector_store %arg13[%c0_128, %c0_129], %191 {strides = array<i32>} : memref<2x2xf32, #tpu.memory_space<vmem>>, vector<2x2xf32>,
    return
  }
  func.func @transform_0(%arg0: i32) -> (i32, i32) {
    %c0_i32 = arith.constant 0 : i32
    %c0_i32_0 = arith.constant 0 : i32
    %c0_i32_1 = arith.constant 0 : i32
    return %c0_i32, %c0_i32_0 : i32, i32
  }
  func.func @transform_1(%arg0: i32) -> (i32, i32) {
    %c0_i32 = arith.constant 0 : i32
    %c0_i32_0 = arith.constant 0 : i32
    %c0_i32_1 = arith.constant 0 : i32
    return %c0_i32, %c0_i32_0 : i32, i32
  }
  func.func @transform_2(%arg0: i32) -> (i32, i32) {
    %c0_i32 = arith.constant 0 : i32
    %c0_i32_0 = arith.constant 0 : i32
    %c0_i32_1 = arith.constant 0 : i32
    return %c0_i32, %c0_i32_0 : i32, i32
  }
  func.func @transform_3(%arg0: i32) -> (i32, i32, i32) {
    %c0_i32 = arith.constant 0 : i32
    %c0_i32_0 = arith.constant 0 : i32
    %c0_i32_1 = arith.constant 0 : i32
    %c0_i32_2 = arith.constant 0 : i32
    return %c0_i32, %c0_i32_0, %c0_i32_1 : i32, i32, i32
  }
  func.func @transform_4(%arg0: i32) -> (i32, i32, i32) {
    %c0_i32 = arith.constant 0 : i32
    %c0_i32_0 = arith.constant 0 : i32
    %c0_i32_1 = arith.constant 0 : i32
    %c0_i32_2 = arith.constant 0 : i32
    return %c0_i32, %c0_i32_0, %c0_i32_1 : i32, i32, i32
  }
  func.func @transform_5(%arg0: i32) -> (i32, i32, i32) {
    %c0_i32 = arith.constant 0 : i32
    %c0_i32_0 = arith.constant 0 : i32
    %c0_i32_1 = arith.constant 0 : i32
    %c0_i32_2 = arith.constant 0 : i32
    return %c0_i32, %c0_i32_0, %c0_i32_1 : i32, i32, i32
  }
  func.func @transform_6(%arg0: i32) -> (i32, i32, i32) {
    %c0_i32 = arith.constant 0 : i32
    %c0_i32_0 = arith.constant 0 : i32
    %c0_i32_1 = arith.constant 0 : i32
    %c0_i32_2 = arith.constant 0 : i32
    return %c0_i32, %c0_i32_0, %c0_i32_1 : i32, i32, i32
  }
  func.func @transform_7(%arg0: i32) -> (i32, i32) {
    %c0_i32 = arith.constant 0 : i32
    %c0_i32_0 = arith.constant 0 : i32
    %c0_i32_1 = arith.constant 0 : i32
    return %c0_i32, %c0_i32_0 : i32, i32
  }
  func.func @transform_8(%arg0: i32) -> (i32, i32) {
    %c0_i32 = arith.constant 0 : i32
    %c0_i32_0 = arith.constant 0 : i32
    %c0_i32_1 = arith.constant 0 : i32
    return %c0_i32, %c0_i32_0 : i32, i32
  }
  func.func @transform_9(%arg0: i32) -> (i32, i32) {
    %c0_i32 = arith.constant 0 : i32
    %c0_i32_0 = arith.constant 0 : i32
    %c0_i32_1 = arith.constant 0 : i32
    return %c0_i32, %c0_i32_0 : i32, i32
  }
  func.func @transform_10(%arg0: i32) -> (i32, i32) {
    %c0_i32 = arith.constant 0 : i32
    %c0_i32_0 = arith.constant 0 : i32
    %c0_i32_1 = arith.constant 0 : i32
    return %c0_i32, %c0_i32_0 : i32, i32
  }
  func.func @transform_11(%arg0: i32) -> (i32, i32) {
    %c0_i32 = arith.constant 0 : i32
    %c0_i32_0 = arith.constant 0 : i32
    %c0_i32_1 = arith.constant 0 : i32
    return %c0_i32, %c0_i32_0 : i32, i32
  }
  func.func @transform_12(%arg0: i32) -> (i32, i32) {
    %c0_i32 = arith.constant 0 : i32
    %c0_i32_0 = arith.constant 0 : i32
    %c0_i32_1 = arith.constant 0 : i32
    return %c0_i32, %c0_i32_0 : i32, i32
  }
}

</mosaic_0001>

<llo_original>
// kernel: forward.1
$region0: #{forward.1}
  #allocation0 [shape = 'u32[]', space=smem, size = 0x4, offset = 0x4, fixed_abs, tag = 'smem constant byte address 0x4 - core index']
  #allocation1 [shape = 'u32[144,128]{1,0:T(1,128)}', space=vmem, size = 0x12000, scoped, tag = 'internal scratch']
  %s0 = inlined_call_operand.vmem [shape: bf16[16,252], index: 0, kind: input, shape index: {}]
  %s1 = inlined_call_operand.vmem [shape: bf16[2,4], index: 1, kind: input, shape index: {}]
  %s2 = inlined_call_operand.vmem [shape: bf16[252,224], index: 2, kind: input, shape index: {}]
  %s3 = inlined_call_operand.vmem [shape: bf16[3,224,160], index: 3, kind: input, shape index: {}]
  %s4 = inlined_call_operand.vmem [shape: bf16[3,160,96], index: 4, kind: input, shape index: {}]
  %s5 = inlined_call_operand.vmem [shape: bf16[3,96,32], index: 5, kind: input, shape index: {}]
  %s6 = inlined_call_operand.vmem [shape: bf16[1,32,32], index: 6, kind: input, shape index: {}]
  %s7 = inlined_call_operand.vmem [shape: bf16[32,64], index: 7, kind: input, shape index: {}]
  %s8 = inlined_call_operand.vmem [shape: bf16[4,64], index: 8, kind: input, shape index: {}]
  %s9 = inlined_call_operand.vmem [shape: bf16[64,64], index: 9, kind: input, shape index: {}]
  %s10 = inlined_call_operand.vmem [shape: bf16[64,2], index: 10, kind: input, shape index: {}]
  %s11 = inlined_call_operand.vmem [shape: f32[1,1536], index: 11, kind: input, shape index: {}]
  %s12 = inlined_call_operand.vmem [shape: f32[2,2], index: 12, kind: output, shape index: {}]
  %s13 = sld [smem:[#allocation0]]
  $region58: #{forward.1} parent=0
    _
  %s15 = ssub.s32 1, %s13
  %s16 = scalar_select 0, %s15, %s13
  // Predicated region
  $region2: #{forward.1} parent=0 // pred_check
    _
  $region3: #{forward.1} parent=0 // pred_check_branch
    %18 = sbr.rel (0) target = $region5
  $region4: #{forward.1} parent=0 // pred_region
    _
  $region5: #{forward.1} parent=0 // pred_fallthru
    _
  // Predicated region
  $region6: #{forward.1} parent=0 // pred_check
    _
  $region7: #{forward.1} parent=0 // pred_check_branch
    %20 = sbr.rel (0) target = $region9
  $region8: #{forward.1} parent=0 // pred_region
    _
  $region9: #{forward.1} parent=0 // pred_fallthru
    _
  // Predicated region
  $region10: #{forward.1} parent=0 // pred_check
    _
  $region11: #{forward.1} parent=0 // pred_check_branch
    %22 = sbr.rel (0) target = $region13
  $region12: #{forward.1} parent=0 // pred_region
    _
  $region13: #{forward.1} parent=0 // pred_fallthru
    _
  // Predicated region
  $region14: #{forward.1} parent=0 // pred_check
    _
  $region15: #{forward.1} parent=0 // pred_check_branch
    %24 = sbr.rel (0) target = $region17
  $region16: #{forward.1} parent=0 // pred_region
    _
  $region17: #{forward.1} parent=0 // pred_fallthru
    _
  // Predicated region
  $region18: #{forward.1} parent=0 // pred_check
    _
  $region19: #{forward.1} parent=0 // pred_check_branch
    %26 = sbr.rel (0) target = $region21
  $region20: #{forward.1} parent=0 // pred_region
    _
  $region21: #{forward.1} parent=0 // pred_fallthru
    _
  // Predicated region
  $region22: #{forward.1} parent=0 // pred_check
    _
  $region23: #{forward.1} parent=0 // pred_check_branch
    %28 = sbr.rel (0) target = $region25
  $region24: #{forward.1} parent=0 // pred_region
    _
  $region25: #{forward.1} parent=0 // pred_fallthru
    _
  // Predicated region
  $region26: #{forward.1} parent=0 // pred_check
    _
  $region27: #{forward.1} parent=0 // pred_check_branch
    %30 = sbr.rel (0) target = $region29
  $region28: #{forward.1} parent=0 // pred_region
    _
  $region29: #{forward.1} parent=0 // pred_fallthru
    _
  // Predicated region
  $region30: #{forward.1} parent=0 // pred_check
    _
  $region31: #{forward.1} parent=0 // pred_check_branch
    %32 = sbr.rel (0) target = $region33
  $region32: #{forward.1} parent=0 // pred_region
    _
  $region33: #{forward.1} parent=0 // pred_fallthru
    _
  // Predicated region
  $region34: #{forward.1} parent=0 // pred_check
    _
  $region35: #{forward.1} parent=0 // pred_check_branch
    %34 = sbr.rel (0) target = $region37
  $region36: #{forward.1} parent=0 // pred_region
    _
  $region37: #{forward.1} parent=0 // pred_fallthru
    _
  // Predicated region
  $region38: #{forward.1} parent=0 // pred_check
    _
  $region39: #{forward.1} parent=0 // pred_check_branch
    %36 = sbr.rel (0) target = $region41
  $region40: #{forward.1} parent=0 // pred_region
    _
  $region41: #{forward.1} parent=0 // pred_fallthru
    _
  // Predicated region
  $region42: #{forward.1} parent=0 // pred_check
    _
  $region43: #{forward.1} parent=0 // pred_check_branch
    %38 = sbr.rel (0) target = $region45
  $region44: #{forward.1} parent=0 // pred_region
    _
  $region45: #{forward.1} parent=0 // pred_fallthru
    _
  // Predicated region
  $region46: #{forward.1} parent=0 // pred_check
    _
  $region47: #{forward.1} parent=0 // pred_check_branch
    %40 = sbr.rel (0) target = $region49
  $region48: #{forward.1} parent=0 // pred_region
    _
  $region49: #{forward.1} parent=0 // pred_fallthru
    _
  %v42 = vld [vmem:[%s0] sm:$0xff]
  %v43 = vld [vmem:[%s0 + $0x8] sm:$0xff]
  %v44 = vld [vmem:[%s2] sm:$0xff]
  %v45 = vld [vmem:[%s2 + $0x8] sm:$0xff]
  %v46 = vld [vmem:[%s2 + $0x10] sm:$0xff]
  %v47 = vld [vmem:[%s2 + $0x18] sm:$0xff]
  %v48 = vld [vmem:[%s2 + $0x20] sm:$0xff]
  %v49 = vld [vmem:[%s2 + $0x28] sm:$0xff]
  %v50 = vld [vmem:[%s2 + $0x30] sm:$0xff]
  %v51 = vld [vmem:[%s2 + $0x38] sm:$0xff]
  %v52 = vld [vmem:[%s2 + $0x40] sm:$0xff]
  %v53 = vld [vmem:[%s2 + $0x48] sm:$0xff]
  %v54 = vld [vmem:[%s2 + $0x50] sm:$0xff]
  %v55 = vld [vmem:[%s2 + $0x58] sm:$0xff]
  %v56 = vld [vmem:[%s2 + $0x60] sm:$0xff]
  %v57 = vld [vmem:[%s2 + $0x68] sm:$0xff]
  %v58 = vld [vmem:[%s2 + $0x70] sm:$0xff]
  %v59 = vld [vmem:[%s2 + $0x78] sm:$0xff]
  %v60 = vld [vmem:[%s2 + $0x80] sm:$0xff]
  %v61 = vld [vmem:[%s2 + $0x88] sm:$0xff]
  %v62 = vld [vmem:[%s2 + $0x90] sm:$0xff]
  %v63 = vld [vmem:[%s2 + $0x98] sm:$0xff]
  %v64 = vld [vmem:[%s2 + $0xa0] sm:$0xff]
  %v65 = vld [vmem:[%s2 + $0xa8] sm:$0xff]
  %v66 = vld [vmem:[%s2 + $0xb0] sm:$0xff]
  %v67 = vld [vmem:[%s2 + $0xb8] sm:$0xff]
  %v68 = vld [vmem:[%s2 + $0xc0] sm:$0xff]
  %v69 = vld [vmem:[%s2 + $0xc8] sm:$0xff]
  %v70 = vld [vmem:[%s2 + $0xd0] sm:$0xff]
  %v71 = vld [vmem:[%s2 + $0xd8] sm:$0xff]
  %v72 = vld [vmem:[%s2 + $0xe0] sm:$0xff]
  %v73 = vld [vmem:[%s2 + $0xe8] sm:$0xff]
  %v74 = vld [vmem:[%s2 + $0xf0] sm:$0xff]
  %v75 = vld [vmem:[%s2 + $0xf8] sm:$0x33]
  %v76 = vld [vmem:[%s11] sm:$0x3]
  %v78 = vlaneseq
  %v79 = vshrl.u32 %v78, 7
  %v80 = vsub.s32 0, %v79
  %v81 = vrot.slane %v76, %v80
  %v82 = vlaneseq
  %v83 = vshrl.u32 %v82, 7
  %v84 = vsub.s32 1, %v83
  %v85 = vrot.slane %v76, %v84
  %v90 = vunpack.c.l.b16 %v42
  %v91 = vunpack.c.h.b16 %v42
  %v92 = vunpack.c.l.b16 %v43
  %v93 = vunpack.c.h.b16 %v43
  %v94 = vpack.c.b16 %v92, %v90
  %v95 = vpack.c.b16 %v93, %v91
  %v129 = vunpack.c.l.b16 %v44
  %v130 = vunpack.c.h.b16 %v44
  %v131 = vunpack.c.l.b16 %v45
  %v132 = vunpack.c.h.b16 %v45
  %v133 = vunpack.c.l.b16 %v46
  %v134 = vunpack.c.h.b16 %v46
  %v135 = vunpack.c.l.b16 %v47
  %v136 = vunpack.c.h.b16 %v47
  %v137 = vunpack.c.l.b16 %v48
  %v138 = vunpack.c.h.b16 %v48
  %v139 = vunpack.c.l.b16 %v49
  %v140 = vunpack.c.h.b16 %v49
  %v141 = vunpack.c.l.b16 %v50
  %v142 = vunpack.c.h.b16 %v50
  %v143 = vunpack.c.l.b16 %v51
  %v144 = vunpack.c.h.b16 %v51
  %v145 = vunpack.c.l.b16 %v52
  %v146 = vunpack.c.h.b16 %v52
  %v147 = vunpack.c.l.b16 %v53
  %v148 = vunpack.c.h.b16 %v53
  %v149 = vunpack.c.l.b16 %v54
  %v150 = vunpack.c.h.b16 %v54
  %v151 = vunpack.c.l.b16 %v55
  %v152 = vunpack.c.h.b16 %v55
  %v153 = vunpack.c.l.b16 %v56
  %v154 = vunpack.c.h.b16 %v56
  %v155 = vunpack.c.l.b16 %v57
  %v156 = vunpack.c.h.b16 %v57
  %v157 = vunpack.c.l.b16 %v58
  %v158 = vunpack.c.h.b16 %v58
  %v159 = vunpack.c.l.b16 %v59
  %v160 = vunpack.c.h.b16 %v59
  %v161 = vunpack.c.l.b16 %v60
  %v162 = vunpack.c.h.b16 %v60
  %v163 = vunpack.c.l.b16 %v61
  %v164 = vunpack.c.h.b16 %v61
  %v165 = vunpack.c.l.b16 %v62
  %v166 = vunpack.c.h.b16 %v62
  %v167 = vunpack.c.l.b16 %v63
  %v168 = vunpack.c.h.b16 %v63
  %v169 = vunpack.c.l.b16 %v64
  %v170 = vunpack.c.h.b16 %v64
  %v171 = vunpack.c.l.b16 %v65
  %v172 = vunpack.c.h.b16 %v65
  %v173 = vunpack.c.l.b16 %v66
  %v174 = vunpack.c.h.b16 %v66
  %v175 = vunpack.c.l.b16 %v67
  %v176 = vunpack.c.h.b16 %v67
  %v177 = vunpack.c.l.b16 %v68
  %v178 = vunpack.c.h.b16 %v68
  %v179 = vunpack.c.l.b16 %v69
  %v180 = vunpack.c.h.b16 %v69
  %v181 = vunpack.c.l.b16 %v70
  %v182 = vunpack.c.h.b16 %v70
  %v183 = vunpack.c.l.b16 %v71
  %v184 = vunpack.c.h.b16 %v71
  %v185 = vunpack.c.l.b16 %v72
  %v186 = vunpack.c.h.b16 %v72
  %v187 = vunpack.c.l.b16 %v73
  %v188 = vunpack.c.h.b16 %v73
  %v189 = vunpack.c.l.b16 %v74
  %v190 = vunpack.c.h.b16 %v74
  %v191 = vunpack.c.l.b16 %v75
  %v192 = vunpack.c.h.b16 %v75
  %v193 = vpack.c.b16 %v131, %v129
  %v194 = vpack.c.b16 %v132, %v130
  %v195 = vpack.c.b16 %v135, %v133
  %v196 = vpack.c.b16 %v136, %v134
  %v197 = vpack.c.b16 %v139, %v137
  %v198 = vpack.c.b16 %v140, %v138
  %v199 = vpack.c.b16 %v143, %v141
  %v200 = vpack.c.b16 %v144, %v142
  %v201 = vpack.c.b16 %v147, %v145
  %v202 = vpack.c.b16 %v148, %v146
  %v203 = vpack.c.b16 %v151, %v149
  %v204 = vpack.c.b16 %v152, %v150
  %v205 = vpack.c.b16 %v155, %v153
  %v206 = vpack.c.b16 %v156, %v154
  %v207 = vpack.c.b16 %v159, %v157
  %v208 = vpack.c.b16 %v160, %v158
  %v209 = vpack.c.b16 %v163, %v161
  %v210 = vpack.c.b16 %v164, %v162
  %v211 = vpack.c.b16 %v167, %v165
  %v212 = vpack.c.b16 %v168, %v166
  %v213 = vpack.c.b16 %v171, %v169
  %v214 = vpack.c.b16 %v172, %v170
  %v215 = vpack.c.b16 %v175, %v173
  %v216 = vpack.c.b16 %v176, %v174
  %v217 = vpack.c.b16 %v179, %v177
  %v218 = vpack.c.b16 %v180, %v178
  %v219 = vpack.c.b16 %v183, %v181
  %v220 = vpack.c.b16 %v184, %v182
  %v221 = vpack.c.b16 %v187, %v185
  %v222 = vpack.c.b16 %v188, %v186
  %v223 = vpack.c.b16 %v191, %v189
  %v224 = vpack.c.b16 %v192, %v190
  %vm255 = vcmask 1014784
  %v257 = vsel %vm255, %v95, 0
  %vm259 = vcmask 1045504
  %v261 = vsel %vm259, %v223, 0
  %v264 = vsel %vm259, %v224, 0
  %266 = vmatprep.subr.bf16.mxu0 %v194
  %267 = vmatpush1.bf16.msra.mxu0 %v193
  %268 = vmatprep.subr.bf16.mxu0 %v196
  %269 = vmatpush1.bf16.msra.mxu0 %v195
  %270 = vmatprep.subr.bf16.mxu0 %v198
  %271 = vmatpush1.bf16.msra.mxu0 %v197
  %272 = vmatprep.subr.bf16.mxu0 %v200
  %273 = vmatpush1.bf16.msra.mxu0 %v199
  %274 = vmatprep.subr.bf16.mxu0 %v202
  %275 = vmatpush1.bf16.msra.mxu0 %v201
  %276 = vmatprep.subr.bf16.mxu0 %v204
  %277 = vmatpush1.bf16.msra.mxu0 %v203
  %278 = vmatprep.subr.bf16.mxu0 %v206
  %279 = vmatpush1.bf16.msra.mxu0 %v205
  %280 = vmatprep.subr.bf16.mxu0 %v208
  %281 = vmatpush1.bf16.msra.mxu0 %v207
  %282 = vmatprep.subr.bf16.mxu0 %v210
  %283 = vmatpush1.bf16.msra.mxu0 %v209
  %284 = vmatprep.subr.bf16.mxu0 %v212
  %285 = vmatpush1.bf16.msra.mxu0 %v211
  %286 = vmatprep.subr.bf16.mxu0 %v214
  %287 = vmatpush1.bf16.msra.mxu0 %v213
  %288 = vmatprep.subr.bf16.mxu0 %v216
  %289 = vmatpush1.bf16.msra.mxu0 %v215
  %290 = vmatprep.subr.bf16.mxu0 %v218
  %291 = vmatpush1.bf16.msra.mxu0 %v217
  %292 = vmatprep.subr.bf16.mxu0 %v220
  %293 = vmatpush1.bf16.msra.mxu0 %v219
  %294 = vmatprep.subr.bf16.mxu0 %v222
  %295 = vmatpush1.bf16.msra.mxu0 %v221
  %296 = vmatprep.subr.bf16.mxu0 %v264
  %297 = vmatpush1.bf16.msra.mxu0 %v261
  %298 = vmatprep.mubr.bf16.mxu0 %v257
  %299 = vmatmul.mubr.bf16.gmra.mrb[0].mxu0 %v94
  %v300 = vpop.f32.mrb[0].mxu0
  %v301 = vadd.f32 %v81, %v300
  %v302 = vpop.f32.mrb[0].mxu0
  %v303 = vadd.f32 %v85, %v302
  %v304 = vpop.f32.mrb[0].mxu0
  %v305 = vadd.f32 %v81, %v304
  %v306 = vpop.f32.mrb[0].mxu0
  %v307 = vadd.f32 %v85, %v306
  %308 = vdwg.mxu0
  %v309 = vmax.f32 %v301, 0.0
  %v310 = vmax.f32 %v303, 0.0
  %v311 = vmax.f32 %v305, 0.0
  %v312 = vmax.f32 %v307, 0.0
  %v313 = vpack.c.bf16 %v309, %v309
  %v314 = vpack.c.bf16 %v310, %v310
  %v315 = vld [vmem:[%s11 + $0x2] sm:$0x3]
  %v316 = vld [vmem:[%s3] sm:$0xff]
  %v317 = vld [vmem:[%s3 + $0x8] sm:$0xff]
  %v318 = vld [vmem:[%s3 + $0x10] sm:$0xff]
  %v319 = vld [vmem:[%s3 + $0x18] sm:$0xff]
  %v320 = vld [vmem:[%s3 + $0x20] sm:$0xff]
  %v321 = vld [vmem:[%s3 + $0x28] sm:$0xff]
  %v322 = vld [vmem:[%s3 + $0x30] sm:$0xff]
  %v323 = vld [vmem:[%s3 + $0x38] sm:$0xff]
  %v324 = vld [vmem:[%s3 + $0x40] sm:$0xff]
  %v325 = vld [vmem:[%s3 + $0x48] sm:$0xff]
  %v326 = vld [vmem:[%s3 + $0x50] sm:$0xff]
  %v327 = vld [vmem:[%s3 + $0x58] sm:$0xff]
  %v328 = vld [vmem:[%s3 + $0x60] sm:$0xff]
  %v329 = vld [vmem:[%s3 + $0x68] sm:$0xff]
  %v330 = vld [vmem:[%s3 + $0x70] sm:$0xff]
  %v331 = vld [vmem:[%s3 + $0x78] sm:$0xff]
  %v332 = vld [vmem:[%s3 + $0x80] sm:$0xff]
  %v333 = vld [vmem:[%s3 + $0x88] sm:$0xff]
  %v334 = vld [vmem:[%s3 + $0x90] sm:$0xff]
  %v335 = vld [vmem:[%s3 + $0x98] sm:$0xff]
  %v336 = vld [vmem:[%s3 + $0xa0] sm:$0xff]
  %v337 = vld [vmem:[%s3 + $0xa8] sm:$0xff]
  %v338 = vld [vmem:[%s3 + $0xb0] sm:$0xff]
  %v339 = vld [vmem:[%s3 + $0xb8] sm:$0xff]
  %v340 = vld [vmem:[%s3 + $0xc0] sm:$0xff]
  %v341 = vld [vmem:[%s3 + $0xc8] sm:$0xff]
  %v342 = vld [vmem:[%s3 + $0xd0] sm:$0xff]
  %v343 = vld [vmem:[%s3 + $0xd8] sm:$0xff]
  %v372 = vunpack.c.l.b16 %v316
  %v373 = vunpack.c.h.b16 %v316
  %v374 = vunpack.c.l.b16 %v317
  %v375 = vunpack.c.h.b16 %v317
  %v376 = vunpack.c.l.b16 %v318
  %v377 = vunpack.c.h.b16 %v318
  %v378 = vunpack.c.l.b16 %v319
  %v379 = vunpack.c.h.b16 %v319
  %v380 = vunpack.c.l.b16 %v320
  %v381 = vunpack.c.h.b16 %v320
  %v382 = vunpack.c.l.b16 %v321
  %v383 = vunpack.c.h.b16 %v321
  %v384 = vunpack.c.l.b16 %v322
  %v385 = vunpack.c.h.b16 %v322
  %v386 = vunpack.c.l.b16 %v323
  %v387 = vunpack.c.h.b16 %v323
  %v388 = vunpack.c.l.b16 %v324
  %v389 = vunpack.c.h.b16 %v324
  %v390 = vunpack.c.l.b16 %v325
  %v391 = vunpack.c.h.b16 %v325
  %v392 = vunpack.c.l.b16 %v326
  %v393 = vunpack.c.h.b16 %v326
  %v394 = vunpack.c.l.b16 %v327
  %v395 = vunpack.c.h.b16 %v327
  %v396 = vunpack.c.l.b16 %v328
  %v397 = vunpack.c.h.b16 %v328
  %v398 = vunpack.c.l.b16 %v329
  %v399 = vunpack.c.h.b16 %v329
  %v400 = vunpack.c.l.b16 %v330
  %v401 = vunpack.c.h.b16 %v330
  %v402 = vunpack.c.l.b16 %v331
  %v403 = vunpack.c.h.b16 %v331
  %v404 = vunpack.c.l.b16 %v332
  %v405 = vunpack.c.h.b16 %v332
  %v406 = vunpack.c.l.b16 %v333
  %v407 = vunpack.c.h.b16 %v333
  %v408 = vunpack.c.l.b16 %v334
  %v409 = vunpack.c.h.b16 %v334
  %v410 = vunpack.c.l.b16 %v335
  %v411 = vunpack.c.h.b16 %v335
  %v412 = vunpack.c.l.b16 %v336
  %v413 = vunpack.c.h.b16 %v336
  %v414 = vunpack.c.l.b16 %v337
  %v415 = vunpack.c.h.b16 %v337
  %v416 = vunpack.c.l.b16 %v338
  %v417 = vunpack.c.h.b16 %v338
  %v418 = vunpack.c.l.b16 %v339
  %v419 = vunpack.c.h.b16 %v339
  %v420 = vunpack.c.l.b16 %v340
  %v421 = vunpack.c.h.b16 %v340
  %v422 = vunpack.c.l.b16 %v341
  %v423 = vunpack.c.h.b16 %v341
  %v424 = vunpack.c.l.b16 %v342
  %v425 = vunpack.c.h.b16 %v342
  %v426 = vunpack.c.l.b16 %v343
  %v427 = vunpack.c.h.b16 %v343
  %v428 = vpack.c.b16 %v374, %v372
  %v429 = vpack.c.b16 %v375, %v373
  %v430 = vpack.c.b16 %v378, %v376
  %v431 = vpack.c.b16 %v379, %v377
  %v432 = vpack.c.b16 %v382, %v380
  %v433 = vpack.c.b16 %v383, %v381
  %v434 = vpack.c.b16 %v386, %v384
  %v435 = vpack.c.b16 %v387, %v385
  %v436 = vpack.c.b16 %v390, %v388
  %v437 = vpack.c.b16 %v391, %v389
  %v438 = vpack.c.b16 %v394, %v392
  %v439 = vpack.c.b16 %v395, %v393
  %v440 = vpack.c.b16 %v398, %v396
  %v441 = vpack.c.b16 %v399, %v397
  %v442 = vpack.c.b16 %v402, %v400
  %v443 = vpack.c.b16 %v403, %v401
  %v444 = vpack.c.b16 %v406, %v404
  %v445 = vpack.c.b16 %v407, %v405
  %v446 = vpack.c.b16 %v410, %v408
  %v447 = vpack.c.b16 %v411, %v409
  %v448 = vpack.c.b16 %v414, %v412
  %v449 = vpack.c.b16 %v415, %v413
  %v450 = vpack.c.b16 %v418, %v416
  %v451 = vpack.c.b16 %v419, %v417
  %v452 = vpack.c.b16 %v422, %v420
  %v453 = vpack.c.b16 %v423, %v421
  %v454 = vpack.c.b16 %v426, %v424
  %v455 = vpack.c.b16 %v427, %v425
  %vm484 = vcmask 785408
  %v486 = vsel %vm484, %v314, 0
  %488 = vmatprep.subr.bf16.mxu0 %v429
  %489 = vmatpush1.bf16.msra.mxu0 %v428
  %490 = vmatprep.subr.bf16.mxu0 %v431
  %491 = vmatpush1.bf16.msra.mxu0 %v430
  %492 = vmatprep.subr.bf16.mxu0 %v433
  %493 = vmatpush1.bf16.msra.mxu0 %v432
  %494 = vmatprep.subr.bf16.mxu0 %v435
  %495 = vmatpush1.bf16.msra.mxu0 %v434
  %496 = vmatprep.subr.bf16.mxu0 %v437
  %497 = vmatpush1.bf16.msra.mxu0 %v436
  %498 = vmatprep.subr.bf16.mxu0 %v439
  %499 = vmatpush1.bf16.msra.mxu0 %v438
  %500 = vmatprep.subr.bf16.mxu0 %v441
  %501 = vmatpush1.bf16.msra.mxu0 %v440
  %502 = vmatprep.subr.bf16.mxu0 %v443
  %503 = vmatpush1.bf16.msra.mxu0 %v442
  %504 = vmatprep.subr.bf16.mxu0 %v445
  %505 = vmatpush1.bf16.msra.mxu0 %v444
  %506 = vmatprep.subr.bf16.mxu0 %v447
  %507 = vmatpush1.bf16.msra.mxu0 %v446
  %508 = vmatprep.subr.bf16.mxu0 %v449
  %509 = vmatpush1.bf16.msra.mxu0 %v448
  %510 = vmatprep.subr.bf16.mxu0 %v451
  %511 = vmatpush1.bf16.msra.mxu0 %v450
  %512 = vmatprep.subr.bf16.mxu0 %v453
  %513 = vmatpush1.bf16.msra.mxu0 %v452
  %514 = vmatprep.subr.bf16.mxu0 %v455
  %515 = vmatpush1.bf16.msra.mxu0 %v454
  %516 = vmatprep.subr.bf16.mxu0 0
  %517 = vmatpush1.bf16.msra.mxu0 0
  %518 = vmatprep.subr.bf16.mxu0 0
  %519 = vmatpush1.bf16.msra.mxu0 0
  %520 = vmatprep.mubr.bf16.mxu0 %v486
  %521 = vmatmul.mubr.bf16.gmra.mrb[0].mxu0 %v313
  %v522 = vpop.f32.mrb[0].mxu0
  %v523 = vadd.f32 0.0, %v522
  %v524 = vpop.f32.mrb[0].mxu0
  %v525 = vadd.f32 0.0, %v524
  %v526 = vpop.f32.mrb[0].mxu0
  %v527 = vpop.f32.mrb[0].mxu0
  %528 = vdwg.mxu0
  %v530 = vlaneseq
  %v531 = vshrl.u32 %v530, 7
  %v532 = vsub.s32 0, %v531
  %v533 = vrot.slane %v315, %v532
  %v534 = vlaneseq
  %v535 = vshrl.u32 %v534, 7
  %v536 = vsub.s32 1, %v535
  %v537 = vrot.slane %v315, %v536
  %v540 = vadd.f32 %v533, %v523
  %v541 = vadd.f32 %v537, %v525
  %s542 = scalar_lea.vmem %s3, 224
  %v543 = vld [vmem:[%s542] sm:$0xff]
  %v544 = vld [vmem:[%s542 + $0x8] sm:$0xff]
  %v545 = vld [vmem:[%s542 + $0x10] sm:$0xff]
  %v546 = vld [vmem:[%s542 + $0x18] sm:$0xff]
  %v547 = vld [vmem:[%s542 + $0x20] sm:$0xff]
  %v548 = vld [vmem:[%s542 + $0x28] sm:$0xff]
  %v549 = vld [vmem:[%s542 + $0x30] sm:$0xff]
  %v550 = vld [vmem:[%s542 + $0x38] sm:$0xff]
  %v551 = vld [vmem:[%s542 + $0x40] sm:$0xff]
  %v552 = vld [vmem:[%s542 + $0x48] sm:$0xff]
  %v553 = vld [vmem:[%s542 + $0x50] sm:$0xff]
  %v554 = vld [vmem:[%s542 + $0x58] sm:$0xff]
  %v555 = vld [vmem:[%s542 + $0x60] sm:$0xff]
  %v556 = vld [vmem:[%s542 + $0x68] sm:$0xff]
  %v557 = vld [vmem:[%s542 + $0x70] sm:$0xff]
  %v558 = vld [vmem:[%s542 + $0x78] sm:$0xff]
  %v559 = vld [vmem:[%s542 + $0x80] sm:$0xff]
  %v560 = vld [vmem:[%s542 + $0x88] sm:$0xff]
  %v561 = vld [vmem:[%s542 + $0x90] sm:$0xff]
  %v562 = vld [vmem:[%s542 + $0x98] sm:$0xff]
  %v563 = vld [vmem:[%s542 + $0xa0] sm:$0xff]
  %v564 = vld [vmem:[%s542 + $0xa8] sm:$0xff]
  %v565 = vld [vmem:[%s542 + $0xb0] sm:$0xff]
  %v566 = vld [vmem:[%s542 + $0xb8] sm:$0xff]
  %v567 = vld [vmem:[%s542 + $0xc0] sm:$0xff]
  %v568 = vld [vmem:[%s542 + $0xc8] sm:$0xff]
  %v569 = vld [vmem:[%s542 + $0xd0] sm:$0xff]
  %v570 = vld [vmem:[%s542 + $0xd8] sm:$0xff]
  %v572 = vshrl.u32 %v313, 16
  %v574 = vshll.u32 %v313, 16
  %v576 = vrot.slane %v574, 1
  %v577 = vor.u32 %v572, %v576
  %v578 = vshrl.u32 %v314, 16
  %v580 = vshll.u32 %v314, 16
  %v582 = vrot.slane %v580, 1
  %v583 = vor.u32 %v578, %v582
  %v613 = vunpack.c.l.b16 %v543
  %v614 = vunpack.c.h.b16 %v543
  %v615 = vunpack.c.l.b16 %v544
  %v616 = vunpack.c.h.b16 %v544
  %v617 = vunpack.c.l.b16 %v545
  %v618 = vunpack.c.h.b16 %v545
  %v619 = vunpack.c.l.b16 %v546
  %v620 = vunpack.c.h.b16 %v546
  %v621 = vunpack.c.l.b16 %v547
  %v622 = vunpack.c.h.b16 %v547
  %v623 = vunpack.c.l.b16 %v548
  %v624 = vunpack.c.h.b16 %v548
  %v625 = vunpack.c.l.b16 %v549
  %v626 = vunpack.c.h.b16 %v549
  %v627 = vunpack.c.l.b16 %v550
  %v628 = vunpack.c.h.b16 %v550
  %v629 = vunpack.c.l.b16 %v551
  %v630 = vunpack.c.h.b16 %v551
  %v631 = vunpack.c.l.b16 %v552
  %v632 = vunpack.c.h.b16 %v552
  %v633 = vunpack.c.l.b16 %v553
  %v634 = vunpack.c.h.b16 %v553
  %v635 = vunpack.c.l.b16 %v554
  %v636 = vunpack.c.h.b16 %v554
  %v637 = vunpack.c.l.b16 %v555
  %v638 = vunpack.c.h.b16 %v555
  %v639 = vunpack.c.l.b16 %v556
  %v640 = vunpack.c.h.b16 %v556
  %v641 = vunpack.c.l.b16 %v557
  %v642 = vunpack.c.h.b16 %v557
  %v643 = vunpack.c.l.b16 %v558
  %v644 = vunpack.c.h.b16 %v558
  %v645 = vunpack.c.l.b16 %v559
  %v646 = vunpack.c.h.b16 %v559
  %v647 = vunpack.c.l.b16 %v560
  %v648 = vunpack.c.h.b16 %v560
  %v649 = vunpack.c.l.b16 %v561
  %v650 = vunpack.c.h.b16 %v561
  %v651 = vunpack.c.l.b16 %v562
  %v652 = vunpack.c.h.b16 %v562
  %v653 = vunpack.c.l.b16 %v563
  %v654 = vunpack.c.h.b16 %v563
  %v655 = vunpack.c.l.b16 %v564
  %v656 = vunpack.c.h.b16 %v564
  %v657 = vunpack.c.l.b16 %v565
  %v658 = vunpack.c.h.b16 %v565
  %v659 = vunpack.c.l.b16 %v566
  %v660 = vunpack.c.h.b16 %v566
  %v661 = vunpack.c.l.b16 %v567
  %v662 = vunpack.c.h.b16 %v567
  %v663 = vunpack.c.l.b16 %v568
  %v664 = vunpack.c.h.b16 %v568
  %v665 = vunpack.c.l.b16 %v569
  %v666 = vunpack.c.h.b16 %v569
  %v667 = vunpack.c.l.b16 %v570
  %v668 = vunpack.c.h.b16 %v570
  %v669 = vpack.c.b16 %v615, %v613
  %v670 = vpack.c.b16 %v616, %v614
  %v671 = vpack.c.b16 %v619, %v617
  %v672 = vpack.c.b16 %v620, %v618
  %v673 = vpack.c.b16 %v623, %v621
  %v674 = vpack.c.b16 %v624, %v622
  %v675 = vpack.c.b16 %v627, %v625
  %v676 = vpack.c.b16 %v628, %v626
  %v677 = vpack.c.b16 %v631, %v629
  %v678 = vpack.c.b16 %v632, %v630
  %v679 = vpack.c.b16 %v635, %v633
  %v680 = vpack.c.b16 %v636, %v634
  %v681 = vpack.c.b16 %v639, %v637
  %v682 = vpack.c.b16 %v640, %v638
  %v683 = vpack.c.b16 %v643, %v641
  %v684 = vpack.c.b16 %v644, %v642
  %v685 = vpack.c.b16 %v647, %v645
  %v686 = vpack.c.b16 %v648, %v646
  %v687 = vpack.c.b16 %v651, %v649
  %v688 = vpack.c.b16 %v652, %v650
  %v689 = vpack.c.b16 %v655, %v653
  %v690 = vpack.c.b16 %v656, %v654
  %v691 = vpack.c.b16 %v659, %v657
  %v692 = vpack.c.b16 %v660, %v658
  %v693 = vpack.c.b16 %v663, %v661
  %v694 = vpack.c.b16 %v664, %v662
  %v695 = vpack.c.b16 %v667, %v665
  %v696 = vpack.c.b16 %v668, %v666
  %v726 = vsel %vm484, %v583, 0
  %728 = vmatprep.subr.bf16.mxu0 %v670
  %729 = vmatpush1.bf16.msra.mxu0 %v669
  %730 = vmatprep.subr.bf16.mxu0 %v672
  %731 = vmatpush1.bf16.msra.mxu0 %v671
  %732 = vmatprep.subr.bf16.mxu0 %v674
  %733 = vmatpush1.bf16.msra.mxu0 %v673
  %734 = vmatprep.subr.bf16.mxu0 %v676
  %735 = vmatpush1.bf16.msra.mxu0 %v675
  %736 = vmatprep.subr.bf16.mxu0 %v678
  %737 = vmatpush1.bf16.msra.mxu0 %v677
  %738 = vmatprep.subr.bf16.mxu0 %v680
  %739 = vmatpush1.bf16.msra.mxu0 %v679
  %740 = vmatprep.subr.bf16.mxu0 %v682
  %741 = vmatpush1.bf16.msra.mxu0 %v681
  %742 = vmatprep.subr.bf16.mxu0 %v684
  %743 = vmatpush1.bf16.msra.mxu0 %v683
  %744 = vmatprep.subr.bf16.mxu0 %v686
  %745 = vmatpush1.bf16.msra.mxu0 %v685
  %746 = vmatprep.subr.bf16.mxu0 %v688
  %747 = vmatpush1.bf16.msra.mxu0 %v687
  %748 = vmatprep.subr.bf16.mxu0 %v690
  %749 = vmatpush1.bf16.msra.mxu0 %v689
  %750 = vmatprep.subr.bf16.mxu0 %v692
  %751 = vmatpush1.bf16.msra.mxu0 %v691
  %752 = vmatprep.subr.bf16.mxu0 %v694
  %753 = vmatpush1.bf16.msra.mxu0 %v693
  %754 = vmatprep.subr.bf16.mxu0 %v696
  %755 = vmatpush1.bf16.msra.mxu0 %v695
  %756 = vmatprep.subr.bf16.mxu0 0
  %757 = vmatpush1.bf16.msra.mxu0 0
  %758 = vmatprep.subr.bf16.mxu0 0
  %759 = vmatpush1.bf16.msra.mxu0 0
  %760 = vmatprep.mubr.bf16.mxu0 %v726
  %761 = vmatmul.mubr.bf16.gmra.mrb[0].mxu0 %v577
  %v762 = vpop.f32.mrb[0].mxu0
  %v763 = vadd.f32 0.0, %v762
  %v764 = vpop.f32.mrb[0].mxu0
  %v765 = vadd.f32 0.0, %v764
  %v766 = vpop.f32.mrb[0].mxu0
  %v767 = vpop.f32.mrb[0].mxu0
  %768 = vdwg.mxu0
  %v769 = vadd.f32 %v540, %v763
  %v770 = vadd.f32 %v541, %v765
  %s771 = scalar_lea.vmem %s3, 448
  %v772 = vld [vmem:[%s771] sm:$0xff]
  %v773 = vld [vmem:[%s771 + $0x8] sm:$0xff]
  %v774 = vld [vmem:[%s771 + $0x10] sm:$0xff]
  %v775 = vld [vmem:[%s771 + $0x18] sm:$0xff]
  %v776 = vld [vmem:[%s771 + $0x20] sm:$0xff]
  %v777 = vld [vmem:[%s771 + $0x28] sm:$0xff]
  %v778 = vld [vmem:[%s771 + $0x30] sm:$0xff]
  %v779 = vld [vmem:[%s771 + $0x38] sm:$0xff]
  %v780 = vld [vmem:[%s771 + $0x40] sm:$0xff]
  %v781 = vld [vmem:[%s771 + $0x48] sm:$0xff]
  %v782 = vld [vmem:[%s771 + $0x50] sm:$0xff]
  %v783 = vld [vmem:[%s771 + $0x58] sm:$0xff]
  %v784 = vld [vmem:[%s771 + $0x60] sm:$0xff]
  %v785 = vld [vmem:[%s771 + $0x68] sm:$0xff]
  %v786 = vld [vmem:[%s771 + $0x70] sm:$0xff]
  %v787 = vld [vmem:[%s771 + $0x78] sm:$0xff]
  %v788 = vld [vmem:[%s771 + $0x80] sm:$0xff]
  %v789 = vld [vmem:[%s771 + $0x88] sm:$0xff]
  %v790 = vld [vmem:[%s771 + $0x90] sm:$0xff]
  %v791 = vld [vmem:[%s771 + $0x98] sm:$0xff]
  %v792 = vld [vmem:[%s771 + $0xa0] sm:$0xff]
  %v793 = vld [vmem:[%s771 + $0xa8] sm:$0xff]
  %v794 = vld [vmem:[%s771 + $0xb0] sm:$0xff]
  %v795 = vld [vmem:[%s771 + $0xb8] sm:$0xff]
  %v796 = vld [vmem:[%s771 + $0xc0] sm:$0xff]
  %v797 = vld [vmem:[%s771 + $0xc8] sm:$0xff]
  %v798 = vld [vmem:[%s771 + $0xd0] sm:$0xff]
  %v799 = vld [vmem:[%s771 + $0xd8] sm:$0xff]
  %v802 = vrot.slane %v313, 1
  %v803 = vrot.slane %v314, 1
  %v833 = vunpack.c.l.b16 %v772
  %v834 = vunpack.c.h.b16 %v772
  %v835 = vunpack.c.l.b16 %v773
  %v836 = vunpack.c.h.b16 %v773
  %v837 = vunpack.c.l.b16 %v774
  %v838 = vunpack.c.h.b16 %v774
  %v839 = vunpack.c.l.b16 %v775
  %v840 = vunpack.c.h.b16 %v775
  %v841 = vunpack.c.l.b16 %v776
  %v842 = vunpack.c.h.b16 %v776
  %v843 = vunpack.c.l.b16 %v777
  %v844 = vunpack.c.h.b16 %v777
  %v845 = vunpack.c.l.b16 %v778
  %v846 = vunpack.c.h.b16 %v778
  %v847 = vunpack.c.l.b16 %v779
  %v848 = vunpack.c.h.b16 %v779
  %v849 = vunpack.c.l.b16 %v780
  %v850 = vunpack.c.h.b16 %v780
  %v851 = vunpack.c.l.b16 %v781
  %v852 = vunpack.c.h.b16 %v781
  %v853 = vunpack.c.l.b16 %v782
  %v854 = vunpack.c.h.b16 %v782
  %v855 = vunpack.c.l.b16 %v783
  %v856 = vunpack.c.h.b16 %v783
  %v857 = vunpack.c.l.b16 %v784
  %v858 = vunpack.c.h.b16 %v784
  %v859 = vunpack.c.l.b16 %v785
  %v860 = vunpack.c.h.b16 %v785
  %v861 = vunpack.c.l.b16 %v786
  %v862 = vunpack.c.h.b16 %v786
  %v863 = vunpack.c.l.b16 %v787
  %v864 = vunpack.c.h.b16 %v787
  %v865 = vunpack.c.l.b16 %v788
  %v866 = vunpack.c.h.b16 %v788
  %v867 = vunpack.c.l.b16 %v789
  %v868 = vunpack.c.h.b16 %v789
  %v869 = vunpack.c.l.b16 %v790
  %v870 = vunpack.c.h.b16 %v790
  %v871 = vunpack.c.l.b16 %v791
  %v872 = vunpack.c.h.b16 %v791
  %v873 = vunpack.c.l.b16 %v792
  %v874 = vunpack.c.h.b16 %v792
  %v875 = vunpack.c.l.b16 %v793
  %v876 = vunpack.c.h.b16 %v793
  %v877 = vunpack.c.l.b16 %v794
  %v878 = vunpack.c.h.b16 %v794
  %v879 = vunpack.c.l.b16 %v795
  %v880 = vunpack.c.h.b16 %v795
  %v881 = vunpack.c.l.b16 %v796
  %v882 = vunpack.c.h.b16 %v796
  %v883 = vunpack.c.l.b16 %v797
  %v884 = vunpack.c.h.b16 %v797
  %v885 = vunpack.c.l.b16 %v798
  %v886 = vunpack.c.h.b16 %v798
  %v887 = vunpack.c.l.b16 %v799
  %v888 = vunpack.c.h.b16 %v799
  %v889 = vpack.c.b16 %v835, %v833
  %v890 = vpack.c.b16 %v836, %v834
  %v891 = vpack.c.b16 %v839, %v837
  %v892 = vpack.c.b16 %v840, %v838
  %v893 = vpack.c.b16 %v843, %v841
  %v894 = vpack.c.b16 %v844, %v842
  %v895 = vpack.c.b16 %v847, %v845
  %v896 = vpack.c.b16 %v848, %v846
  %v897 = vpack.c.b16 %v851, %v849
  %v898 = vpack.c.b16 %v852, %v850
  %v899 = vpack.c.b16 %v855, %v853
  %v900 = vpack.c.b16 %v856, %v854
  %v901 = vpack.c.b16 %v859, %v857
  %v902 = vpack.c.b16 %v860, %v858
  %v903 = vpack.c.b16 %v863, %v861
  %v904 = vpack.c.b16 %v864, %v862
  %v905 = vpack.c.b16 %v867, %v865
  %v906 = vpack.c.b16 %v868, %v866
  %v907 = vpack.c.b16 %v871, %v869
  %v908 = vpack.c.b16 %v872, %v870
  %v909 = vpack.c.b16 %v875, %v873
  %v910 = vpack.c.b16 %v876, %v874
  %v911 = vpack.c.b16 %v879, %v877
  %v912 = vpack.c.b16 %v880, %v878
  %v913 = vpack.c.b16 %v883, %v881
  %v914 = vpack.c.b16 %v884, %v882
  %v915 = vpack.c.b16 %v887, %v885
  %v916 = vpack.c.b16 %v888, %v886
  %v946 = vsel %vm484, %v803, 0
  %948 = vmatprep.subr.bf16.mxu0 %v890
  %949 = vmatpush1.bf16.msra.mxu0 %v889
  %950 = vmatprep.subr.bf16.mxu0 %v892
  %951 = vmatpush1.bf16.msra.mxu0 %v891
  %952 = vmatprep.subr.bf16.mxu0 %v894
  %953 = vmatpush1.bf16.msra.mxu0 %v893
  %954 = vmatprep.subr.bf16.mxu0 %v896
  %955 = vmatpush1.bf16.msra.mxu0 %v895
  %956 = vmatprep.subr.bf16.mxu0 %v898
  %957 = vmatpush1.bf16.msra.mxu0 %v897
  %958 = vmatprep.subr.bf16.mxu0 %v900
  %959 = vmatpush1.bf16.msra.mxu0 %v899
  %960 = vmatprep.subr.bf16.mxu0 %v902
  %961 = vmatpush1.bf16.msra.mxu0 %v901
  %962 = vmatprep.subr.bf16.mxu0 %v904
  %963 = vmatpush1.bf16.msra.mxu0 %v903
  %964 = vmatprep.subr.bf16.mxu0 %v906
  %965 = vmatpush1.bf16.msra.mxu0 %v905
  %966 = vmatprep.subr.bf16.mxu0 %v908
  %967 = vmatpush1.bf16.msra.mxu0 %v907
  %968 = vmatprep.subr.bf16.mxu0 %v910
  %969 = vmatpush1.bf16.msra.mxu0 %v909
  %970 = vmatprep.subr.bf16.mxu0 %v912
  %971 = vmatpush1.bf16.msra.mxu0 %v911
  %972 = vmatprep.subr.bf16.mxu0 %v914
  %973 = vmatpush1.bf16.msra.mxu0 %v913
  %974 = vmatprep.subr.bf16.mxu0 %v916
  %975 = vmatpush1.bf16.msra.mxu0 %v915
  %976 = vmatprep.subr.bf16.mxu0 0
  %977 = vmatpush1.bf16.msra.mxu0 0
  %978 = vmatprep.subr.bf16.mxu0 0
  %979 = vmatpush1.bf16.msra.mxu0 0
  %980 = vmatprep.mubr.bf16.mxu0 %v946
  %981 = vmatmul.mubr.bf16.gmra.mrb[0].mxu0 %v802
  %v982 = vpop.f32.mrb[0].mxu0
  %v983 = vadd.f32 0.0, %v982
  %v984 = vpop.f32.mrb[0].mxu0
  %v985 = vadd.f32 0.0, %v984
  %v986 = vpop.f32.mrb[0].mxu0
  %v987 = vpop.f32.mrb[0].mxu0
  %988 = vdwg.mxu0
  %v989 = vadd.f32 %v769, %v983
  %v990 = vadd.f32 %v770, %v985
  %v991 = vmax.f32 %v989, 0.0
  %v992 = vmax.f32 %v990, 0.0
  %v993 = vpack.c.bf16 %v991, %v991
  %v994 = vpack.c.bf16 %v992, %v992
  %v995 = vld [vmem:[%s11 + $0x4] sm:$0x1]
  %v996 = vld [vmem:[%s4] sm:$0xf]
  %v997 = vld [vmem:[%s4 + $0x4] sm:$0xf]
  %v998 = vld [vmem:[%s4 + $0x8] sm:$0xf]
  %v999 = vld [vmem:[%s4 + $0xc] sm:$0xf]
  %v1000 = vld [vmem:[%s4 + $0x10] sm:$0xf]
  %v1001 = vld [vmem:[%s4 + $0x14] sm:$0xf]
  %v1002 = vld [vmem:[%s4 + $0x18] sm:$0xf]
  %v1003 = vld [vmem:[%s4 + $0x1c] sm:$0xf]
  %v1004 = vld [vmem:[%s4 + $0x20] sm:$0xf]
  %v1005 = vld [vmem:[%s4 + $0x24] sm:$0xf]
  %v1006 = vld [vmem:[%s4 + $0x28] sm:$0xf]
  %v1007 = vld [vmem:[%s4 + $0x2c] sm:$0xf]
  %v1008 = vld [vmem:[%s4 + $0x30] sm:$0xf]
  %v1009 = vld [vmem:[%s4 + $0x34] sm:$0xf]
  %v1010 = vld [vmem:[%s4 + $0x38] sm:$0xf]
  %v1011 = vld [vmem:[%s4 + $0x3c] sm:$0xf]
  %v1012 = vld [vmem:[%s4 + $0x40] sm:$0xf]
  %v1013 = vld [vmem:[%s4 + $0x44] sm:$0xf]
  %v1014 = vld [vmem:[%s4 + $0x48] sm:$0xf]
  %v1015 = vld [vmem:[%s4 + $0x4c] sm:$0xf]
  %v1036 = vunpack.c.l.b16 %v996
  %v1037 = vunpack.c.l.b16 %v997
  %v1038 = vunpack.c.l.b16 %v998
  %v1039 = vunpack.c.l.b16 %v999
  %v1040 = vunpack.c.l.b16 %v1000
  %v1041 = vunpack.c.l.b16 %v1001
  %v1042 = vunpack.c.l.b16 %v1002
  %v1043 = vunpack.c.l.b16 %v1003
  %v1044 = vunpack.c.l.b16 %v1004
  %v1045 = vunpack.c.l.b16 %v1005
  %v1046 = vunpack.c.l.b16 %v1006
  %v1047 = vunpack.c.l.b16 %v1007
  %v1048 = vunpack.c.l.b16 %v1008
  %v1049 = vunpack.c.l.b16 %v1009
  %v1050 = vunpack.c.l.b16 %v1010
  %v1051 = vunpack.c.l.b16 %v1011
  %v1052 = vunpack.c.l.b16 %v1012
  %v1053 = vunpack.c.l.b16 %v1013
  %v1054 = vunpack.c.l.b16 %v1014
  %v1055 = vunpack.c.l.b16 %v1015
  %v1056 = vpack.c.b16 %v1037, %v1036
  %v1057 = vpack.c.b16 %v1039, %v1038
  %v1058 = vpack.c.b16 %v1041, %v1040
  %v1059 = vpack.c.b16 %v1043, %v1042
  %v1060 = vpack.c.b16 %v1045, %v1044
  %v1061 = vpack.c.b16 %v1047, %v1046
  %v1062 = vpack.c.b16 %v1049, %v1048
  %v1063 = vpack.c.b16 %v1051, %v1050
  %v1064 = vpack.c.b16 %v1053, %v1052
  %v1065 = vpack.c.b16 %v1055, %v1054
  %vm1076 = vcmask 261120
  %v1078 = vsel %vm1076, %v994, 0
  %1080 = vmatprep.subr.bf16.mxu0 0
  %1081 = vmatpush1.bf16.msra.mxu0 %v1056
  %1082 = vmatprep.subr.bf16.mxu0 0
  %1083 = vmatpush1.bf16.msra.mxu0 %v1057
  %1084 = vmatprep.subr.bf16.mxu0 0
  %1085 = vmatpush1.bf16.msra.mxu0 %v1058
  %1086 = vmatprep.subr.bf16.mxu0 0
  %1087 = vmatpush1.bf16.msra.mxu0 %v1059
  %1088 = vmatprep.subr.bf16.mxu0 0
  %1089 = vmatpush1.bf16.msra.mxu0 %v1060
  %1090 = vmatprep.subr.bf16.mxu0 0
  %1091 = vmatpush1.bf16.msra.mxu0 %v1061
  %1092 = vmatprep.subr.bf16.mxu0 0
  %1093 = vmatpush1.bf16.msra.mxu0 %v1062
  %1094 = vmatprep.subr.bf16.mxu0 0
  %1095 = vmatpush1.bf16.msra.mxu0 %v1063
  %1096 = vmatprep.subr.bf16.mxu0 0
  %1097 = vmatpush1.bf16.msra.mxu0 %v1064
  %1098 = vmatprep.subr.bf16.mxu0 0
  %1099 = vmatpush1.bf16.msra.mxu0 %v1065
  %1100 = vmatprep.subr.bf16.mxu0 0
  %1101 = vmatpush1.bf16.msra.mxu0 0
  %1102 = vmatprep.subr.bf16.mxu0 0
  %1103 = vmatpush1.bf16.msra.mxu0 0
  %1104 = vmatprep.subr.bf16.mxu0 0
  %1105 = vmatpush1.bf16.msra.mxu0 0
  %1106 = vmatprep.subr.bf16.mxu0 0
  %1107 = vmatpush1.bf16.msra.mxu0 0
  %1108 = vmatprep.subr.bf16.mxu0 0
  %1109 = vmatpush1.bf16.msra.mxu0 0
  %1110 = vmatprep.subr.bf16.mxu0 0
  %1111 = vmatpush1.bf16.msra.mxu0 0
  %1112 = vmatprep.mubr.bf16.mxu0 %v1078
  %1113 = vmatmul.mubr.bf16.gmra.mrb[0].mxu0 %v993
  %v1114 = vpop.f32.mrb[0].mxu0
  %v1115 = vadd.f32 0.0, %v1114
  %v1116 = vpop.f32.mrb[0].mxu0
  %v1117 = vpop.f32.mrb[0].mxu0
  %v1118 = vpop.f32.mrb[0].mxu0
  %1119 = vdwg.mxu0
  %v1121 = vlaneseq
  %v1122 = vshrl.u32 %v1121, 7
  %v1123 = vsub.s32 0, %v1122
  %v1124 = vrot.slane %v995, %v1123
  %v1126 = vadd.f32 %v1124, %v1115
  %s1127 = scalar_lea.vmem %s4, 80
  %v1128 = vld [vmem:[%s1127] sm:$0xf]
  %v1129 = vld [vmem:[%s1127 + $0x4] sm:$0xf]
  %v1130 = vld [vmem:[%s1127 + $0x8] sm:$0xf]
  %v1131 = vld [vmem:[%s1127 + $0xc] sm:$0xf]
  %v1132 = vld [vmem:[%s1127 + $0x10] sm:$0xf]
  %v1133 = vld [vmem:[%s1127 + $0x14] sm:$0xf]
  %v1134 = vld [vmem:[%s1127 + $0x18] sm:$0xf]
  %v1135 = vld [vmem:[%s1127 + $0x1c] sm:$0xf]
  %v1136 = vld [vmem:[%s1127 + $0x20] sm:$0xf]
  %v1137 = vld [vmem:[%s1127 + $0x24] sm:$0xf]
  %v1138 = vld [vmem:[%s1127 + $0x28] sm:$0xf]
  %v1139 = vld [vmem:[%s1127 + $0x2c] sm:$0xf]
  %v1140 = vld [vmem:[%s1127 + $0x30] sm:$0xf]
  %v1141 = vld [vmem:[%s1127 + $0x34] sm:$0xf]
  %v1142 = vld [vmem:[%s1127 + $0x38] sm:$0xf]
  %v1143 = vld [vmem:[%s1127 + $0x3c] sm:$0xf]
  %v1144 = vld [vmem:[%s1127 + $0x40] sm:$0xf]
  %v1145 = vld [vmem:[%s1127 + $0x44] sm:$0xf]
  %v1146 = vld [vmem:[%s1127 + $0x48] sm:$0xf]
  %v1147 = vld [vmem:[%s1127 + $0x4c] sm:$0xf]
  %v1149 = vshrl.u32 %v993, 16
  %v1151 = vshll.u32 %v993, 16
  %v1153 = vrot.slane %v1151, 1
  %v1154 = vor.u32 %v1149, %v1153
  %v1155 = vshrl.u32 %v994, 16
  %v1157 = vshll.u32 %v994, 16
  %v1159 = vrot.slane %v1157, 1
  %v1160 = vor.u32 %v1155, %v1159
  %v1182 = vunpack.c.l.b16 %v1128
  %v1183 = vunpack.c.l.b16 %v1129
  %v1184 = vunpack.c.l.b16 %v1130
  %v1185 = vunpack.c.l.b16 %v1131
  %v1186 = vunpack.c.l.b16 %v1132
  %v1187 = vunpack.c.l.b16 %v1133
  %v1188 = vunpack.c.l.b16 %v1134
  %v1189 = vunpack.c.l.b16 %v1135
  %v1190 = vunpack.c.l.b16 %v1136
  %v1191 = vunpack.c.l.b16 %v1137
  %v1192 = vunpack.c.l.b16 %v1138
  %v1193 = vunpack.c.l.b16 %v1139
  %v1194 = vunpack.c.l.b16 %v1140
  %v1195 = vunpack.c.l.b16 %v1141
  %v1196 = vunpack.c.l.b16 %v1142
  %v1197 = vunpack.c.l.b16 %v1143
  %v1198 = vunpack.c.l.b16 %v1144
  %v1199 = vunpack.c.l.b16 %v1145
  %v1200 = vunpack.c.l.b16 %v1146
  %v1201 = vunpack.c.l.b16 %v1147
  %v1202 = vpack.c.b16 %v1183, %v1182
  %v1203 = vpack.c.b16 %v1185, %v1184
  %v1204 = vpack.c.b16 %v1187, %v1186
  %v1205 = vpack.c.b16 %v1189, %v1188
  %v1206 = vpack.c.b16 %v1191, %v1190
  %v1207 = vpack.c.b16 %v1193, %v1192
  %v1208 = vpack.c.b16 %v1195, %v1194
  %v1209 = vpack.c.b16 %v1197, %v1196
  %v1210 = vpack.c.b16 %v1199, %v1198
  %v1211 = vpack.c.b16 %v1201, %v1200
  %v1223 = vsel %vm1076, %v1160, 0
  %1225 = vmatprep.subr.bf16.mxu0 0
  %1226 = vmatpush1.bf16.msra.mxu0 %v1202
  %1227 = vmatprep.subr.bf16.mxu0 0
  %1228 = vmatpush1.bf16.msra.mxu0 %v1203
  %1229 = vmatprep.subr.bf16.mxu0 0
  %1230 = vmatpush1.bf16.msra.mxu0 %v1204
  %1231 = vmatprep.subr.bf16.mxu0 0
  %1232 = vmatpush1.bf16.msra.mxu0 %v1205
  %1233 = vmatprep.subr.bf16.mxu0 0
  %1234 = vmatpush1.bf16.msra.mxu0 %v1206
  %1235 = vmatprep.subr.bf16.mxu0 0
  %1236 = vmatpush1.bf16.msra.mxu0 %v1207
  %1237 = vmatprep.subr.bf16.mxu0 0
  %1238 = vmatpush1.bf16.msra.mxu0 %v1208
  %1239 = vmatprep.subr.bf16.mxu0 0
  %1240 = vmatpush1.bf16.msra.mxu0 %v1209
  %1241 = vmatprep.subr.bf16.mxu0 0
  %1242 = vmatpush1.bf16.msra.mxu0 %v1210
  %1243 = vmatprep.subr.bf16.mxu0 0
  %1244 = vmatpush1.bf16.msra.mxu0 %v1211
  %1245 = vmatprep.subr.bf16.mxu0 0
  %1246 = vmatpush1.bf16.msra.mxu0 0
  %1247 = vmatprep.subr.bf16.mxu0 0
  %1248 = vmatpush1.bf16.msra.mxu0 0
  %1249 = vmatprep.subr.bf16.mxu0 0
  %1250 = vmatpush1.bf16.msra.mxu0 0
  %1251 = vmatprep.subr.bf16.mxu0 0
  %1252 = vmatpush1.bf16.msra.mxu0 0
  %1253 = vmatprep.subr.bf16.mxu0 0
  %1254 = vmatpush1.bf16.msra.mxu0 0
  %1255 = vmatprep.subr.bf16.mxu0 0
  %1256 = vmatpush1.bf16.msra.mxu0 0
  %1257 = vmatprep.mubr.bf16.mxu0 %v1223
  %1258 = vmatmul.mubr.bf16.gmra.mrb[0].mxu0 %v1154
  %v1259 = vpop.f32.mrb[0].mxu0
  %v1260 = vadd.f32 0.0, %v1259
  %v1261 = vpop.f32.mrb[0].mxu0
  %v1262 = vpop.f32.mrb[0].mxu0
  %v1263 = vpop.f32.mrb[0].mxu0
  %1264 = vdwg.mxu0
  %v1265 = vadd.f32 %v1126, %v1260
  %s1266 = scalar_lea.vmem %s4, 160
  %v1267 = vld [vmem:[%s1266] sm:$0xf]
  %v1268 = vld [vmem:[%s1266 + $0x4] sm:$0xf]
  %v1269 = vld [vmem:[%s1266 + $0x8] sm:$0xf]
  %v1270 = vld [vmem:[%s1266 + $0xc] sm:$0xf]
  %v1271 = vld [vmem:[%s1266 + $0x10] sm:$0xf]
  %v1272 = vld [vmem:[%s1266 + $0x14] sm:$0xf]
  %v1273 = vld [vmem:[%s1266 + $0x18] sm:$0xf]
  %v1274 = vld [vmem:[%s1266 + $0x1c] sm:$0xf]
  %v1275 = vld [vmem:[%s1266 + $0x20] sm:$0xf]
  %v1276 = vld [vmem:[%s1266 + $0x24] sm:$0xf]
  %v1277 = vld [vmem:[%s1266 + $0x28] sm:$0xf]
  %v1278 = vld [vmem:[%s1266 + $0x2c] sm:$0xf]
  %v1279 = vld [vmem:[%s1266 + $0x30] sm:$0xf]
  %v1280 = vld [vmem:[%s1266 + $0x34] sm:$0xf]
  %v1281 = vld [vmem:[%s1266 + $0x38] sm:$0xf]
  %v1282 = vld [vmem:[%s1266 + $0x3c] sm:$0xf]
  %v1283 = vld [vmem:[%s1266 + $0x40] sm:$0xf]
  %v1284 = vld [vmem:[%s1266 + $0x44] sm:$0xf]
  %v1285 = vld [vmem:[%s1266 + $0x48] sm:$0xf]
  %v1286 = vld [vmem:[%s1266 + $0x4c] sm:$0xf]
  %v1289 = vrot.slane %v993, 1
  %v1290 = vrot.slane %v994, 1
  %v1312 = vunpack.c.l.b16 %v1267
  %v1313 = vunpack.c.l.b16 %v1268
  %v1314 = vunpack.c.l.b16 %v1269
  %v1315 = vunpack.c.l.b16 %v1270
  %v1316 = vunpack.c.l.b16 %v1271
  %v1317 = vunpack.c.l.b16 %v1272
  %v1318 = vunpack.c.l.b16 %v1273
  %v1319 = vunpack.c.l.b16 %v1274
  %v1320 = vunpack.c.l.b16 %v1275
  %v1321 = vunpack.c.l.b16 %v1276
  %v1322 = vunpack.c.l.b16 %v1277
  %v1323 = vunpack.c.l.b16 %v1278
  %v1324 = vunpack.c.l.b16 %v1279
  %v1325 = vunpack.c.l.b16 %v1280
  %v1326 = vunpack.c.l.b16 %v1281
  %v1327 = vunpack.c.l.b16 %v1282
  %v1328 = vunpack.c.l.b16 %v1283
  %v1329 = vunpack.c.l.b16 %v1284
  %v1330 = vunpack.c.l.b16 %v1285
  %v1331 = vunpack.c.l.b16 %v1286
  %v1332 = vpack.c.b16 %v1313, %v1312
  %v1333 = vpack.c.b16 %v1315, %v1314
  %v1334 = vpack.c.b16 %v1317, %v1316
  %v1335 = vpack.c.b16 %v1319, %v1318
  %v1336 = vpack.c.b16 %v1321, %v1320
  %v1337 = vpack.c.b16 %v1323, %v1322
  %v1338 = vpack.c.b16 %v1325, %v1324
  %v1339 = vpack.c.b16 %v1327, %v1326
  %v1340 = vpack.c.b16 %v1329, %v1328
  %v1341 = vpack.c.b16 %v1331, %v1330
  %v1353 = vsel %vm1076, %v1290, 0
  %1355 = vmatprep.subr.bf16.mxu0 0
  %1356 = vmatpush1.bf16.msra.mxu0 %v1332
  %1357 = vmatprep.subr.bf16.mxu0 0
  %1358 = vmatpush1.bf16.msra.mxu0 %v1333
  %1359 = vmatprep.subr.bf16.mxu0 0
  %1360 = vmatpush1.bf16.msra.mxu0 %v1334
  %1361 = vmatprep.subr.bf16.mxu0 0
  %1362 = vmatpush1.bf16.msra.mxu0 %v1335
  %1363 = vmatprep.subr.bf16.mxu0 0
  %1364 = vmatpush1.bf16.msra.mxu0 %v1336
  %1365 = vmatprep.subr.bf16.mxu0 0
  %1366 = vmatpush1.bf16.msra.mxu0 %v1337
  %1367 = vmatprep.subr.bf16.mxu0 0
  %1368 = vmatpush1.bf16.msra.mxu0 %v1338
  %1369 = vmatprep.subr.bf16.mxu0 0
  %1370 = vmatpush1.bf16.msra.mxu0 %v1339
  %1371 = vmatprep.subr.bf16.mxu0 0
  %1372 = vmatpush1.bf16.msra.mxu0 %v1340
  %1373 = vmatprep.subr.bf16.mxu0 0
  %1374 = vmatpush1.bf16.msra.mxu0 %v1341
  %1375 = vmatprep.subr.bf16.mxu0 0
  %1376 = vmatpush1.bf16.msra.mxu0 0
  %1377 = vmatprep.subr.bf16.mxu0 0
  %1378 = vmatpush1.bf16.msra.mxu0 0
  %1379 = vmatprep.subr.bf16.mxu0 0
  %1380 = vmatpush1.bf16.msra.mxu0 0
  %1381 = vmatprep.subr.bf16.mxu0 0
  %1382 = vmatpush1.bf16.msra.mxu0 0
  %1383 = vmatprep.subr.bf16.mxu0 0
  %1384 = vmatpush1.bf16.msra.mxu0 0
  %1385 = vmatprep.subr.bf16.mxu0 0
  %1386 = vmatpush1.bf16.msra.mxu0 0
  %1387 = vmatprep.mubr.bf16.mxu0 %v1353
  %1388 = vmatmul.mubr.bf16.gmra.mrb[0].mxu0 %v1289
  %v1389 = vpop.f32.mrb[0].mxu0
  %v1390 = vadd.f32 0.0, %v1389
  %v1391 = vpop.f32.mrb[0].mxu0
  %v1392 = vpop.f32.mrb[0].mxu0
  %v1393 = vpop.f32.mrb[0].mxu0
  %1394 = vdwg.mxu0
  %v1395 = vadd.f32 %v1265, %v1390
  %v1396 = vmax.f32 %v1395, 0.0
  %v1397 = vpack.c.bf16 %v1396, %v1396
  %v1398 = vld [vmem:[%s11 + $0x5] sm:$0x1]
  %v1399 = vld [vmem:[%s5] sm:$0xf]
  %v1400 = vld [vmem:[%s5 + $0x4] sm:$0xf]
  %v1401 = vld [vmem:[%s5 + $0x8] sm:$0xf]
  %v1402 = vld [vmem:[%s5 + $0xc] sm:$0xf]
  %v1403 = vld [vmem:[%s5 + $0x10] sm:$0xf]
  %v1404 = vld [vmem:[%s5 + $0x14] sm:$0xf]
  %v1405 = vld [vmem:[%s5 + $0x18] sm:$0xf]
  %v1406 = vld [vmem:[%s5 + $0x1c] sm:$0xf]
  %v1407 = vld [vmem:[%s5 + $0x20] sm:$0xf]
  %v1408 = vld [vmem:[%s5 + $0x24] sm:$0xf]
  %v1409 = vld [vmem:[%s5 + $0x28] sm:$0xf]
  %v1410 = vld [vmem:[%s5 + $0x2c] sm:$0xf]
  %v1423 = vunpack.c.l.b16 %v1399
  %v1424 = vunpack.c.l.b16 %v1400
  %v1425 = vunpack.c.l.b16 %v1401
  %v1426 = vunpack.c.l.b16 %v1402
  %v1427 = vunpack.c.l.b16 %v1403
  %v1428 = vunpack.c.l.b16 %v1404
  %v1429 = vunpack.c.l.b16 %v1405
  %v1430 = vunpack.c.l.b16 %v1406
  %v1431 = vunpack.c.l.b16 %v1407
  %v1432 = vunpack.c.l.b16 %v1408
  %v1433 = vunpack.c.l.b16 %v1409
  %v1434 = vunpack.c.l.b16 %v1410
  %v1435 = vpack.c.b16 %v1424, %v1423
  %v1436 = vpack.c.b16 %v1426, %v1425
  %v1437 = vpack.c.b16 %v1428, %v1427
  %v1438 = vpack.c.b16 %v1430, %v1429
  %v1439 = vpack.c.b16 %v1432, %v1431
  %v1440 = vpack.c.b16 %v1434, %v1433
  %v1448 = vsel %vm484, %v1397, 0
  %1450 = vmatprep.subr.bf16.mxu0 0
  %1451 = vmatpush1.bf16.msra.mxu0 %v1435
  %1452 = vmatprep.subr.bf16.mxu0 0
  %1453 = vmatpush1.bf16.msra.mxu0 %v1436
  %1454 = vmatprep.subr.bf16.mxu0 0
  %1455 = vmatpush1.bf16.msra.mxu0 %v1437
  %1456 = vmatprep.subr.bf16.mxu0 0
  %1457 = vmatpush1.bf16.msra.mxu0 %v1438
  %1458 = vmatprep.subr.bf16.mxu0 0
  %1459 = vmatpush1.bf16.msra.mxu0 %v1439
  %1460 = vmatprep.subr.bf16.mxu0 0
  %1461 = vmatpush1.bf16.msra.mxu0 %v1440
  %1462 = vmatprep.subr.bf16.mxu0 0
  %1463 = vmatpush1.bf16.msra.mxu0 0
  %1464 = vmatprep.subr.bf16.mxu0 0
  %1465 = vmatpush1.bf16.msra.mxu0 0
  %1466 = vmatprep.subr.bf16.mxu0 0
  %1467 = vmatpush1.bf16.msra.mxu0 0
  %1468 = vmatprep.subr.bf16.mxu0 0
  %1469 = vmatpush1.bf16.msra.mxu0 0
  %1470 = vmatprep.subr.bf16.mxu0 0
  %1471 = vmatpush1.bf16.msra.mxu0 0
  %1472 = vmatprep.subr.bf16.mxu0 0
  %1473 = vmatpush1.bf16.msra.mxu0 0
  %1474 = vmatprep.subr.bf16.mxu0 0
  %1475 = vmatpush1.bf16.msra.mxu0 0
  %1476 = vmatprep.subr.bf16.mxu0 0
  %1477 = vmatpush1.bf16.msra.mxu0 0
  %1478 = vmatprep.subr.bf16.mxu0 0
  %1479 = vmatpush1.bf16.msra.mxu0 0
  %1480 = vmatprep.subr.bf16.mxu0 0
  %1481 = vmatpush1.bf16.msra.mxu0 0
  %1482 = vmatprep.mubr.bf16.mxu0 0
  %1483 = vmatmul.mubr.bf16.gmra.mrb[0].mxu0 %v1448
  %v1484 = vpop.f32.mrb[0].mxu0
  %v1485 = vadd.f32 0.0, %v1484
  %v1486 = vpop.f32.mrb[0].mxu0
  %v1487 = vpop.f32.mrb[0].mxu0
  %v1488 = vpop.f32.mrb[0].mxu0
  %1489 = vdwg.mxu0
  %v1490 = vadd.f32 %v1398, %v1485
  %s1491 = scalar_lea.vmem %s5, 48
  %v1492 = vld [vmem:[%s1491] sm:$0xf]
  %v1493 = vld [vmem:[%s1491 + $0x4] sm:$0xf]
  %v1494 = vld [vmem:[%s1491 + $0x8] sm:$0xf]
  %v1495 = vld [vmem:[%s1491 + $0xc] sm:$0xf]
  %v1496 = vld [vmem:[%s1491 + $0x10] sm:$0xf]
  %v1497 = vld [vmem:[%s1491 + $0x14] sm:$0xf]
  %v1498 = vld [vmem:[%s1491 + $0x18] sm:$0xf]
  %v1499 = vld [vmem:[%s1491 + $0x1c] sm:$0xf]
  %v1500 = vld [vmem:[%s1491 + $0x20] sm:$0xf]
  %v1501 = vld [vmem:[%s1491 + $0x24] sm:$0xf]
  %v1502 = vld [vmem:[%s1491 + $0x28] sm:$0xf]
  %v1503 = vld [vmem:[%s1491 + $0x2c] sm:$0xf]
  %v1504 = vshrl.u32 %v1397, 16
  %v1518 = vunpack.c.l.b16 %v1492
  %v1519 = vunpack.c.l.b16 %v1493
  %v1520 = vunpack.c.l.b16 %v1494
  %v1521 = vunpack.c.l.b16 %v1495
  %v1522 = vunpack.c.l.b16 %v1496
  %v1523 = vunpack.c.l.b16 %v1497
  %v1524 = vunpack.c.l.b16 %v1498
  %v1525 = vunpack.c.l.b16 %v1499
  %v1526 = vunpack.c.l.b16 %v1500
  %v1527 = vunpack.c.l.b16 %v1501
  %v1528 = vunpack.c.l.b16 %v1502
  %v1529 = vunpack.c.l.b16 %v1503
  %v1530 = vpack.c.b16 %v1519, %v1518
  %v1531 = vpack.c.b16 %v1521, %v1520
  %v1532 = vpack.c.b16 %v1523, %v1522
  %v1533 = vpack.c.b16 %v1525, %v1524
  %v1534 = vpack.c.b16 %v1527, %v1526
  %v1535 = vpack.c.b16 %v1529, %v1528
  %v1543 = vsel %vm484, %v1504, 0
  %1545 = vmatprep.subr.bf16.mxu0 0
  %1546 = vmatpush1.bf16.msra.mxu0 %v1530
  %1547 = vmatprep.subr.bf16.mxu0 0
  %1548 = vmatpush1.bf16.msra.mxu0 %v1531
  %1549 = vmatprep.subr.bf16.mxu0 0
  %1550 = vmatpush1.bf16.msra.mxu0 %v1532
  %1551 = vmatprep.subr.bf16.mxu0 0
  %1552 = vmatpush1.bf16.msra.mxu0 %v1533
  %1553 = vmatprep.subr.bf16.mxu0 0
  %1554 = vmatpush1.bf16.msra.mxu0 %v1534
  %1555 = vmatprep.subr.bf16.mxu0 0
  %1556 = vmatpush1.bf16.msra.mxu0 %v1535
  %1557 = vmatprep.subr.bf16.mxu0 0
  %1558 = vmatpush1.bf16.msra.mxu0 0
  %1559 = vmatprep.subr.bf16.mxu0 0
  %1560 = vmatpush1.bf16.msra.mxu0 0
  %1561 = vmatprep.subr.bf16.mxu0 0
  %1562 = vmatpush1.bf16.msra.mxu0 0
  %1563 = vmatprep.subr.bf16.mxu0 0
  %1564 = vmatpush1.bf16.msra.mxu0 0
  %1565 = vmatprep.subr.bf16.mxu0 0
  %1566 = vmatpush1.bf16.msra.mxu0 0
  %1567 = vmatprep.subr.bf16.mxu0 0
  %1568 = vmatpush1.bf16.msra.mxu0 0
  %1569 = vmatprep.subr.bf16.mxu0 0
  %1570 = vmatpush1.bf16.msra.mxu0 0
  %1571 = vmatprep.subr.bf16.mxu0 0
  %1572 = vmatpush1.bf16.msra.mxu0 0
  %1573 = vmatprep.subr.bf16.mxu0 0
  %1574 = vmatpush1.bf16.msra.mxu0 0
  %1575 = vmatprep.subr.bf16.mxu0 0
  %1576 = vmatpush1.bf16.msra.mxu0 0
  %1577 = vmatprep.mubr.bf16.mxu0 0
  %1578 = vmatmul.mubr.bf16.gmra.mrb[0].mxu0 %v1543
  %v1579 = vpop.f32.mrb[0].mxu0
  %v1580 = vadd.f32 0.0, %v1579
  %v1581 = vpop.f32.mrb[0].mxu0
  %v1582 = vpop.f32.mrb[0].mxu0
  %v1583 = vpop.f32.mrb[0].mxu0
  %1584 = vdwg.mxu0
  %v1585 = vadd.f32 %v1490, %v1580
  %s1586 = scalar_lea.vmem %s5, 96
  %v1587 = vld [vmem:[%s1586] sm:$0xf]
  %v1588 = vld [vmem:[%s1586 + $0x4] sm:$0xf]
  %v1589 = vld [vmem:[%s1586 + $0x8] sm:$0xf]
  %v1590 = vld [vmem:[%s1586 + $0xc] sm:$0xf]
  %v1591 = vld [vmem:[%s1586 + $0x10] sm:$0xf]
  %v1592 = vld [vmem:[%s1586 + $0x14] sm:$0xf]
  %v1593 = vld [vmem:[%s1586 + $0x18] sm:$0xf]
  %v1594 = vld [vmem:[%s1586 + $0x1c] sm:$0xf]
  %v1595 = vld [vmem:[%s1586 + $0x20] sm:$0xf]
  %v1596 = vld [vmem:[%s1586 + $0x24] sm:$0xf]
  %v1597 = vld [vmem:[%s1586 + $0x28] sm:$0xf]
  %v1598 = vld [vmem:[%s1586 + $0x2c] sm:$0xf]
  %v1600 = vrot.slane %v1397, 1
  %v1613 = vunpack.c.l.b16 %v1587
  %v1614 = vunpack.c.l.b16 %v1588
  %v1615 = vunpack.c.l.b16 %v1589
  %v1616 = vunpack.c.l.b16 %v1590
  %v1617 = vunpack.c.l.b16 %v1591
  %v1618 = vunpack.c.l.b16 %v1592
  %v1619 = vunpack.c.l.b16 %v1593
  %v1620 = vunpack.c.l.b16 %v1594
  %v1621 = vunpack.c.l.b16 %v1595
  %v1622 = vunpack.c.l.b16 %v1596
  %v1623 = vunpack.c.l.b16 %v1597
  %v1624 = vunpack.c.l.b16 %v1598
  %v1625 = vpack.c.b16 %v1614, %v1613
  %v1626 = vpack.c.b16 %v1616, %v1615
  %v1627 = vpack.c.b16 %v1618, %v1617
  %v1628 = vpack.c.b16 %v1620, %v1619
  %v1629 = vpack.c.b16 %v1622, %v1621
  %v1630 = vpack.c.b16 %v1624, %v1623
  %v1638 = vsel %vm484, %v1600, 0
  %1640 = vmatprep.subr.bf16.mxu0 0
  %1641 = vmatpush1.bf16.msra.mxu0 %v1625
  %1642 = vmatprep.subr.bf16.mxu0 0
  %1643 = vmatpush1.bf16.msra.mxu0 %v1626
  %1644 = vmatprep.subr.bf16.mxu0 0
  %1645 = vmatpush1.bf16.msra.mxu0 %v1627
  %1646 = vmatprep.subr.bf16.mxu0 0
  %1647 = vmatpush1.bf16.msra.mxu0 %v1628
  %1648 = vmatprep.subr.bf16.mxu0 0
  %1649 = vmatpush1.bf16.msra.mxu0 %v1629
  %1650 = vmatprep.subr.bf16.mxu0 0
  %1651 = vmatpush1.bf16.msra.mxu0 %v1630
  %1652 = vmatprep.subr.bf16.mxu0 0
  %1653 = vmatpush1.bf16.msra.mxu0 0
  %1654 = vmatprep.subr.bf16.mxu0 0
  %1655 = vmatpush1.bf16.msra.mxu0 0
  %1656 = vmatprep.subr.bf16.mxu0 0
  %1657 = vmatpush1.bf16.msra.mxu0 0
  %1658 = vmatprep.subr.bf16.mxu0 0
  %1659 = vmatpush1.bf16.msra.mxu0 0
  %1660 = vmatprep.subr.bf16.mxu0 0
  %1661 = vmatpush1.bf16.msra.mxu0 0
  %1662 = vmatprep.subr.bf16.mxu0 0
  %1663 = vmatpush1.bf16.msra.mxu0 0
  %1664 = vmatprep.subr.bf16.mxu0 0
  %1665 = vmatpush1.bf16.msra.mxu0 0
  %1666 = vmatprep.subr.bf16.mxu0 0
  %1667 = vmatpush1.bf16.msra.mxu0 0
  %1668 = vmatprep.subr.bf16.mxu0 0
  %1669 = vmatpush1.bf16.msra.mxu0 0
  %1670 = vmatprep.subr.bf16.mxu0 0
  %1671 = vmatpush1.bf16.msra.mxu0 0
  %1672 = vmatprep.mubr.bf16.mxu0 0
  %1673 = vmatmul.mubr.bf16.gmra.mrb[0].mxu0 %v1638
  %v1674 = vpop.f32.mrb[0].mxu0
  %v1675 = vadd.f32 0.0, %v1674
  %v1676 = vpop.f32.mrb[0].mxu0
  %v1677 = vpop.f32.mrb[0].mxu0
  %v1678 = vpop.f32.mrb[0].mxu0
  %1679 = vdwg.mxu0
  %v1680 = vadd.f32 %v1585, %v1675
  %v1681 = vmax.f32 %v1680, 0.0
  %v1682 = vpack.c.bf16 %v1681, %v1681
  %v1683 = vld [vmem:[%s11 + $0x6] sm:$0x1]
  %v1684 = vld [vmem:[%s6] sm:$0xf]
  %v1685 = vld [vmem:[%s6 + $0x4] sm:$0xf]
  %v1686 = vld [vmem:[%s6 + $0x8] sm:$0xf]
  %v1687 = vld [vmem:[%s6 + $0xc] sm:$0xf]
  %v1692 = vunpack.c.l.b16 %v1684
  %v1693 = vunpack.c.l.b16 %v1685
  %v1694 = vunpack.c.l.b16 %v1686
  %v1695 = vunpack.c.l.b16 %v1687
  %v1696 = vpack.c.b16 %v1693, %v1692
  %v1697 = vpack.c.b16 %v1695, %v1694
  %v1701 = vsel %vm1076, %v1682, 0
  %1703 = vmatprep.subr.bf16.mxu0 0
  %1704 = vmatpush1.bf16.msra.mxu0 %v1696
  %1705 = vmatprep.subr.bf16.mxu0 0
  %1706 = vmatpush1.bf16.msra.mxu0 %v1697
  %1707 = vmatprep.subr.bf16.mxu0 0
  %1708 = vmatpush1.bf16.msra.mxu0 0
  %1709 = vmatprep.subr.bf16.mxu0 0
  %1710 = vmatpush1.bf16.msra.mxu0 0
  %1711 = vmatprep.subr.bf16.mxu0 0
  %1712 = vmatpush1.bf16.msra.mxu0 0
  %1713 = vmatprep.subr.bf16.mxu0 0
  %1714 = vmatpush1.bf16.msra.mxu0 0
  %1715 = vmatprep.subr.bf16.mxu0 0
  %1716 = vmatpush1.bf16.msra.mxu0 0
  %1717 = vmatprep.subr.bf16.mxu0 0
  %1718 = vmatpush1.bf16.msra.mxu0 0
  %1719 = vmatprep.subr.bf16.mxu0 0
  %1720 = vmatpush1.bf16.msra.mxu0 0
  %1721 = vmatprep.subr.bf16.mxu0 0
  %1722 = vmatpush1.bf16.msra.mxu0 0
  %1723 = vmatprep.subr.bf16.mxu0 0
  %1724 = vmatpush1.bf16.msra.mxu0 0
  %1725 = vmatprep.subr.bf16.mxu0 0
  %1726 = vmatpush1.bf16.msra.mxu0 0
  %1727 = vmatprep.subr.bf16.mxu0 0
  %1728 = vmatpush1.bf16.msra.mxu0 0
  %1729 = vmatprep.subr.bf16.mxu0 0
  %1730 = vmatpush1.bf16.msra.mxu0 0
  %1731 = vmatprep.subr.bf16.mxu0 0
  %1732 = vmatpush1.bf16.msra.mxu0 0
  %1733 = vmatprep.subr.bf16.mxu0 0
  %1734 = vmatpush1.bf16.msra.mxu0 0
  %1735 = vmatprep.mubr.bf16.mxu0 0
  %1736 = vmatmul.mubr.bf16.gmra.mrb[0].mxu0 %v1701
  %v1737 = vpop.f32.mrb[0].mxu0
  %v1738 = vadd.f32 0.0, %v1737
  %v1739 = vpop.f32.mrb[0].mxu0
  %v1740 = vpop.f32.mrb[0].mxu0
  %v1741 = vpop.f32.mrb[0].mxu0
  %1742 = vdwg.mxu0
  %v1743 = vadd.f32 %v1683, %v1738
  %v1744 = vpack.c.bf16 %v311, %v311
  %v1745 = vpack.c.bf16 %v312, %v312
  %v1747 = vsel %vm484, %v1745, 0
  %1749 = vmatprep.subr.bf16.mxu0 %v429
  %1750 = vmatpush1.bf16.msra.mxu0 %v428
  %1751 = vmatprep.subr.bf16.mxu0 %v431
  %1752 = vmatpush1.bf16.msra.mxu0 %v430
  %1753 = vmatprep.subr.bf16.mxu0 %v433
  %1754 = vmatpush1.bf16.msra.mxu0 %v432
  %1755 = vmatprep.subr.bf16.mxu0 %v435
  %1756 = vmatpush1.bf16.msra.mxu0 %v434
  %1757 = vmatprep.subr.bf16.mxu0 %v437
  %1758 = vmatpush1.bf16.msra.mxu0 %v436
  %1759 = vmatprep.subr.bf16.mxu0 %v439
  %1760 = vmatpush1.bf16.msra.mxu0 %v438
  %1761 = vmatprep.subr.bf16.mxu0 %v441
  %1762 = vmatpush1.bf16.msra.mxu0 %v440
  %1763 = vmatprep.subr.bf16.mxu0 %v443
  %1764 = vmatpush1.bf16.msra.mxu0 %v442
  %1765 = vmatprep.subr.bf16.mxu0 %v445
  %1766 = vmatpush1.bf16.msra.mxu0 %v444
  %1767 = vmatprep.subr.bf16.mxu0 %v447
  %1768 = vmatpush1.bf16.msra.mxu0 %v446
  %1769 = vmatprep.subr.bf16.mxu0 %v449
  %1770 = vmatpush1.bf16.msra.mxu0 %v448
  %1771 = vmatprep.subr.bf16.mxu0 %v451
  %1772 = vmatpush1.bf16.msra.mxu0 %v450
  %1773 = vmatprep.subr.bf16.mxu0 %v453
  %1774 = vmatpush1.bf16.msra.mxu0 %v452
  %1775 = vmatprep.subr.bf16.mxu0 %v455
  %1776 = vmatpush1.bf16.msra.mxu0 %v454
  %1777 = vmatprep.subr.bf16.mxu0 0
  %1778 = vmatpush1.bf16.msra.mxu0 0
  %1779 = vmatprep.subr.bf16.mxu0 0
  %1780 = vmatpush1.bf16.msra.mxu0 0
  %1781 = vmatprep.mubr.bf16.mxu0 %v1747
  %1782 = vmatmul.mubr.bf16.gmra.mrb[0].mxu0 %v1744
  %v1783 = vpop.f32.mrb[0].mxu0
  %v1784 = vadd.f32 0.0, %v1783
  %v1785 = vpop.f32.mrb[0].mxu0
  %v1786 = vadd.f32 0.0, %v1785
  %v1787 = vpop.f32.mrb[0].mxu0
  %v1788 = vpop.f32.mrb[0].mxu0
  %1789 = vdwg.mxu0
  %v1790 = vadd.f32 %v533, %v1784
  %v1791 = vadd.f32 %v537, %v1786
  %v1793 = vshrl.u32 %v1744, 16
  %v1795 = vshll.u32 %v1744, 16
  %v1797 = vrot.slane %v1795, 1
  %v1798 = vor.u32 %v1793, %v1797
  %v1799 = vshrl.u32 %v1745, 16
  %v1801 = vshll.u32 %v1745, 16
  %v1803 = vrot.slane %v1801, 1
  %v1804 = vor.u32 %v1799, %v1803
  %v1807 = vsel %vm484, %v1804, 0
  %1809 = vmatprep.subr.bf16.mxu0 %v670
  %1810 = vmatpush1.bf16.msra.mxu0 %v669
  %1811 = vmatprep.subr.bf16.mxu0 %v672
  %1812 = vmatpush1.bf16.msra.mxu0 %v671
  %1813 = vmatprep.subr.bf16.mxu0 %v674
  %1814 = vmatpush1.bf16.msra.mxu0 %v673
  %1815 = vmatprep.subr.bf16.mxu0 %v676
  %1816 = vmatpush1.bf16.msra.mxu0 %v675
  %1817 = vmatprep.subr.bf16.mxu0 %v678
  %1818 = vmatpush1.bf16.msra.mxu0 %v677
  %1819 = vmatprep.subr.bf16.mxu0 %v680
  %1820 = vmatpush1.bf16.msra.mxu0 %v679
  %1821 = vmatprep.subr.bf16.mxu0 %v682
  %1822 = vmatpush1.bf16.msra.mxu0 %v681
  %1823 = vmatprep.subr.bf16.mxu0 %v684
  %1824 = vmatpush1.bf16.msra.mxu0 %v683
  %1825 = vmatprep.subr.bf16.mxu0 %v686
  %1826 = vmatpush1.bf16.msra.mxu0 %v685
  %1827 = vmatprep.subr.bf16.mxu0 %v688
  %1828 = vmatpush1.bf16.msra.mxu0 %v687
  %1829 = vmatprep.subr.bf16.mxu0 %v690
  %1830 = vmatpush1.bf16.msra.mxu0 %v689
  %1831 = vmatprep.subr.bf16.mxu0 %v692
  %1832 = vmatpush1.bf16.msra.mxu0 %v691
  %1833 = vmatprep.subr.bf16.mxu0 %v694
  %1834 = vmatpush1.bf16.msra.mxu0 %v693
  %1835 = vmatprep.subr.bf16.mxu0 %v696
  %1836 = vmatpush1.bf16.msra.mxu0 %v695
  %1837 = vmatprep.subr.bf16.mxu0 0
  %1838 = vmatpush1.bf16.msra.mxu0 0
  %1839 = vmatprep.subr.bf16.mxu0 0
  %1840 = vmatpush1.bf16.msra.mxu0 0
  %1841 = vmatprep.mubr.bf16.mxu0 %v1807
  %1842 = vmatmul.mubr.bf16.gmra.mrb[0].mxu0 %v1798
  %v1843 = vpop.f32.mrb[0].mxu0
  %v1844 = vadd.f32 0.0, %v1843
  %v1845 = vpop.f32.mrb[0].mxu0
  %v1846 = vadd.f32 0.0, %v1845
  %v1847 = vpop.f32.mrb[0].mxu0
  %v1848 = vpop.f32.mrb[0].mxu0
  %1849 = vdwg.mxu0
  %v1850 = vadd.f32 %v1790, %v1844
  %v1851 = vadd.f32 %v1791, %v1846
  %v1854 = vrot.slane %v1744, 1
  %v1855 = vrot.slane %v1745, 1
  %v1858 = vsel %vm484, %v1855, 0
  %1860 = vmatprep.subr.bf16.mxu0 %v890
  %1861 = vmatpush1.bf16.msra.mxu0 %v889
  %1862 = vmatprep.subr.bf16.mxu0 %v892
  %1863 = vmatpush1.bf16.msra.mxu0 %v891
  %1864 = vmatprep.subr.bf16.mxu0 %v894
  %1865 = vmatpush1.bf16.msra.mxu0 %v893
  %1866 = vmatprep.subr.bf16.mxu0 %v896
  %1867 = vmatpush1.bf16.msra.mxu0 %v895
  %1868 = vmatprep.subr.bf16.mxu0 %v898
  %1869 = vmatpush1.bf16.msra.mxu0 %v897
  %1870 = vmatprep.subr.bf16.mxu0 %v900
  %1871 = vmatpush1.bf16.msra.mxu0 %v899
  %1872 = vmatprep.subr.bf16.mxu0 %v902
  %1873 = vmatpush1.bf16.msra.mxu0 %v901
  %1874 = vmatprep.subr.bf16.mxu0 %v904
  %1875 = vmatpush1.bf16.msra.mxu0 %v903
  %1876 = vmatprep.subr.bf16.mxu0 %v906
  %1877 = vmatpush1.bf16.msra.mxu0 %v905
  %1878 = vmatprep.subr.bf16.mxu0 %v908
  %1879 = vmatpush1.bf16.msra.mxu0 %v907
  %1880 = vmatprep.subr.bf16.mxu0 %v910
  %1881 = vmatpush1.bf16.msra.mxu0 %v909
  %1882 = vmatprep.subr.bf16.mxu0 %v912
  %1883 = vmatpush1.bf16.msra.mxu0 %v911
  %1884 = vmatprep.subr.bf16.mxu0 %v914
  %1885 = vmatpush1.bf16.msra.mxu0 %v913
  %1886 = vmatprep.subr.bf16.mxu0 %v916
  %1887 = vmatpush1.bf16.msra.mxu0 %v915
  %1888 = vmatprep.subr.bf16.mxu0 0
  %1889 = vmatpush1.bf16.msra.mxu0 0
  %1890 = vmatprep.subr.bf16.mxu0 0
  %1891 = vmatpush1.bf16.msra.mxu0 0
  %1892 = vmatprep.mubr.bf16.mxu0 %v1858
  %1893 = vmatmul.mubr.bf16.gmra.mrb[0].mxu0 %v1854
  %v1894 = vpop.f32.mrb[0].mxu0
  %v1895 = vadd.f32 0.0, %v1894
  %v1896 = vpop.f32.mrb[0].mxu0
  %v1897 = vadd.f32 0.0, %v1896
  %v1898 = vpop.f32.mrb[0].mxu0
  %v1899 = vpop.f32.mrb[0].mxu0
  %1900 = vdwg.mxu0
  %v1901 = vadd.f32 %v1850, %v1895
  %v1902 = vadd.f32 %v1851, %v1897
  %v1903 = vmax.f32 %v1901, 0.0
  %v1904 = vmax.f32 %v1902, 0.0
  %v1905 = vpack.c.bf16 %v1903, %v1903
  %v1906 = vpack.c.bf16 %v1904, %v1904
  %v1908 = vsel %vm1076, %v1906, 0
  %1910 = vmatprep.subr.bf16.mxu0 0
  %1911 = vmatpush1.bf16.msra.mxu0 %v1056
  %1912 = vmatprep.subr.bf16.mxu0 0
  %1913 = vmatpush1.bf16.msra.mxu0 %v1057
  %1914 = vmatprep.subr.bf16.mxu0 0
  %1915 = vmatpush1.bf16.msra.mxu0 %v1058
  %1916 = vmatprep.subr.bf16.mxu0 0
  %1917 = vmatpush1.bf16.msra.mxu0 %v1059
  %1918 = vmatprep.subr.bf16.mxu0 0
  %1919 = vmatpush1.bf16.msra.mxu0 %v1060
  %1920 = vmatprep.subr.bf16.mxu0 0
  %1921 = vmatpush1.bf16.msra.mxu0 %v1061
  %1922 = vmatprep.subr.bf16.mxu0 0
  %1923 = vmatpush1.bf16.msra.mxu0 %v1062
  %1924 = vmatprep.subr.bf16.mxu0 0
  %1925 = vmatpush1.bf16.msra.mxu0 %v1063
  %1926 = vmatprep.subr.bf16.mxu0 0
  %1927 = vmatpush1.bf16.msra.mxu0 %v1064
  %1928 = vmatprep.subr.bf16.mxu0 0
  %1929 = vmatpush1.bf16.msra.mxu0 %v1065
  %1930 = vmatprep.subr.bf16.mxu0 0
  %1931 = vmatpush1.bf16.msra.mxu0 0
  %1932 = vmatprep.subr.bf16.mxu0 0
  %1933 = vmatpush1.bf16.msra.mxu0 0
  %1934 = vmatprep.subr.bf16.mxu0 0
  %1935 = vmatpush1.bf16.msra.mxu0 0
  %1936 = vmatprep.subr.bf16.mxu0 0
  %1937 = vmatpush1.bf16.msra.mxu0 0
  %1938 = vmatprep.subr.bf16.mxu0 0
  %1939 = vmatpush1.bf16.msra.mxu0 0
  %1940 = vmatprep.subr.bf16.mxu0 0
  %1941 = vmatpush1.bf16.msra.mxu0 0
  %1942 = vmatprep.mubr.bf16.mxu0 %v1908
  %1943 = vmatmul.mubr.bf16.gmra.mrb[0].mxu0 %v1905
  %v1944 = vpop.f32.mrb[0].mxu0
  %v1945 = vadd.f32 0.0, %v1944
  %v1946 = vpop.f32.mrb[0].mxu0
  %v1947 = vpop.f32.mrb[0].mxu0
  %v1948 = vpop.f32.mrb[0].mxu0
  %1949 = vdwg.mxu0
  %v1950 = vadd.f32 %v1124, %v1945
  %v1952 = vshrl.u32 %v1905, 16
  %v1954 = vshll.u32 %v1905, 16
  %v1956 = vrot.slane %v1954, 1
  %v1957 = vor.u32 %v1952, %v1956
  %v1958 = vshrl.u32 %v1906, 16
  %v1960 = vshll.u32 %v1906, 16
  %v1962 = vrot.slane %v1960, 1
  %v1963 = vor.u32 %v1958, %v1962
  %v1966 = vsel %vm1076, %v1963, 0
  %1968 = vmatprep.subr.bf16.mxu0 0
  %1969 = vmatpush1.bf16.msra.mxu0 %v1202
  %1970 = vmatprep.subr.bf16.mxu0 0
  %1971 = vmatpush1.bf16.msra.mxu0 %v1203
  %1972 = vmatprep.subr.bf16.mxu0 0
  %1973 = vmatpush1.bf16.msra.mxu0 %v1204
  %1974 = vmatprep.subr.bf16.mxu0 0
  %1975 = vmatpush1.bf16.msra.mxu0 %v1205
  %1976 = vmatprep.subr.bf16.mxu0 0
  %1977 = vmatpush1.bf16.msra.mxu0 %v1206
  %1978 = vmatprep.subr.bf16.mxu0 0
  %1979 = vmatpush1.bf16.msra.mxu0 %v1207
  %1980 = vmatprep.subr.bf16.mxu0 0
  %1981 = vmatpush1.bf16.msra.mxu0 %v1208
  %1982 = vmatprep.subr.bf16.mxu0 0
  %1983 = vmatpush1.bf16.msra.mxu0 %v1209
  %1984 = vmatprep.subr.bf16.mxu0 0
  %1985 = vmatpush1.bf16.msra.mxu0 %v1210
  %1986 = vmatprep.subr.bf16.mxu0 0
  %1987 = vmatpush1.bf16.msra.mxu0 %v1211
  %1988 = vmatprep.subr.bf16.mxu0 0
  %1989 = vmatpush1.bf16.msra.mxu0 0
  %1990 = vmatprep.subr.bf16.mxu0 0
  %1991 = vmatpush1.bf16.msra.mxu0 0
  %1992 = vmatprep.subr.bf16.mxu0 0
  %1993 = vmatpush1.bf16.msra.mxu0 0
  %1994 = vmatprep.subr.bf16.mxu0 0
  %1995 = vmatpush1.bf16.msra.mxu0 0
  %1996 = vmatprep.subr.bf16.mxu0 0
  %1997 = vmatpush1.bf16.msra.mxu0 0
  %1998 = vmatprep.subr.bf16.mxu0 0
  %1999 = vmatpush1.bf16.msra.mxu0 0
  %2000 = vmatprep.mubr.bf16.mxu0 %v1966
  %2001 = vmatmul.mubr.bf16.gmra.mrb[0].mxu0 %v1957
  %v2002 = vpop.f32.mrb[0].mxu0
  %v2003 = vadd.f32 0.0, %v2002
  %v2004 = vpop.f32.mrb[0].mxu0
  %v2005 = vpop.f32.mrb[0].mxu0
  %v2006 = vpop.f32.mrb[0].mxu0
  %2007 = vdwg.mxu0
  %v2008 = vadd.f32 %v1950, %v2003
  %v2011 = vrot.slane %v1905, 1
  %v2012 = vrot.slane %v1906, 1
  %v2015 = vsel %vm1076, %v2012, 0
  %2017 = vmatprep.subr.bf16.mxu0 0
  %2018 = vmatpush1.bf16.msra.mxu0 %v1332
  %2019 = vmatprep.subr.bf16.mxu0 0
  %2020 = vmatpush1.bf16.msra.mxu0 %v1333
  %2021 = vmatprep.subr.bf16.mxu0 0
  %2022 = vmatpush1.bf16.msra.mxu0 %v1334
  %2023 = vmatprep.subr.bf16.mxu0 0
  %2024 = vmatpush1.bf16.msra.mxu0 %v1335
  %2025 = vmatprep.subr.bf16.mxu0 0
  %2026 = vmatpush1.bf16.msra.mxu0 %v1336
  %2027 = vmatprep.subr.bf16.mxu0 0
  %2028 = vmatpush1.bf16.msra.mxu0 %v1337
  %2029 = vmatprep.subr.bf16.mxu0 0
  %2030 = vmatpush1.bf16.msra.mxu0 %v1338
  %2031 = vmatprep.subr.bf16.mxu0 0
  %2032 = vmatpush1.bf16.msra.mxu0 %v1339
  %2033 = vmatprep.subr.bf16.mxu0 0
  %2034 = vmatpush1.bf16.msra.mxu0 %v1340
  %2035 = vmatprep.subr.bf16.mxu0 0
  %2036 = vmatpush1.bf16.msra.mxu0 %v1341
  %2037 = vmatprep.subr.bf16.mxu0 0
  %2038 = vmatpush1.bf16.msra.mxu0 0
  %2039 = vmatprep.subr.bf16.mxu0 0
  %2040 = vmatpush1.bf16.msra.mxu0 0
  %2041 = vmatprep.subr.bf16.mxu0 0
  %2042 = vmatpush1.bf16.msra.mxu0 0
  %2043 = vmatprep.subr.bf16.mxu0 0
  %2044 = vmatpush1.bf16.msra.mxu0 0
  %2045 = vmatprep.subr.bf16.mxu0 0
  %2046 = vmatpush1.bf16.msra.mxu0 0
  %2047 = vmatprep.subr.bf16.mxu0 0
  %2048 = vmatpush1.bf16.msra.mxu0 0
  %2049 = vmatprep.mubr.bf16.mxu0 %v2015
  %2050 = vmatmul.mubr.bf16.gmra.mrb[0].mxu0 %v2011
  %v2051 = vpop.f32.mrb[0].mxu0
  %v2052 = vadd.f32 0.0, %v2051
  %v2053 = vpop.f32.mrb[0].mxu0
  %v2054 = vpop.f32.mrb[0].mxu0
  %v2055 = vpop.f32.mrb[0].mxu0
  %2056 = vdwg.mxu0
  %v2057 = vadd.f32 %v2008, %v2052
  %v2058 = vmax.f32 %v2057, 0.0
  %v2059 = vpack.c.bf16 %v2058, %v2058
  %v2061 = vsel %vm484, %v2059, 0
  %2063 = vmatprep.subr.bf16.mxu0 0
  %2064 = vmatpush1.bf16.msra.mxu0 %v1435
  %2065 = vmatprep.subr.bf16.mxu0 0
  %2066 = vmatpush1.bf16.msra.mxu0 %v1436
  %2067 = vmatprep.subr.bf16.mxu0 0
  %2068 = vmatpush1.bf16.msra.mxu0 %v1437
  %2069 = vmatprep.subr.bf16.mxu0 0
  %2070 = vmatpush1.bf16.msra.mxu0 %v1438
  %2071 = vmatprep.subr.bf16.mxu0 0
  %2072 = vmatpush1.bf16.msra.mxu0 %v1439
  %2073 = vmatprep.subr.bf16.mxu0 0
  %2074 = vmatpush1.bf16.msra.mxu0 %v1440
  %2075 = vmatprep.subr.bf16.mxu0 0
  %2076 = vmatpush1.bf16.msra.mxu0 0
  %2077 = vmatprep.subr.bf16.mxu0 0
  %2078 = vmatpush1.bf16.msra.mxu0 0
  %2079 = vmatprep.subr.bf16.mxu0 0
  %2080 = vmatpush1.bf16.msra.mxu0 0
  %2081 = vmatprep.subr.bf16.mxu0 0
  %2082 = vmatpush1.bf16.msra.mxu0 0
  %2083 = vmatprep.subr.bf16.mxu0 0
  %2084 = vmatpush1.bf16.msra.mxu0 0
  %2085 = vmatprep.subr.bf16.mxu0 0
  %2086 = vmatpush1.bf16.msra.mxu0 0
  %2087 = vmatprep.subr.bf16.mxu0 0
  %2088 = vmatpush1.bf16.msra.mxu0 0
  %2089 = vmatprep.subr.bf16.mxu0 0
  %2090 = vmatpush1.bf16.msra.mxu0 0
  %2091 = vmatprep.subr.bf16.mxu0 0
  %2092 = vmatpush1.bf16.msra.mxu0 0
  %2093 = vmatprep.subr.bf16.mxu0 0
  %2094 = vmatpush1.bf16.msra.mxu0 0
  %2095 = vmatprep.mubr.bf16.mxu0 0
  %2096 = vmatmul.mubr.bf16.gmra.mrb[0].mxu0 %v2061
  %v2097 = vpop.f32.mrb[0].mxu0
  %v2098 = vadd.f32 0.0, %v2097
  %v2099 = vpop.f32.mrb[0].mxu0
  %v2100 = vpop.f32.mrb[0].mxu0
  %v2101 = vpop.f32.mrb[0].mxu0
  %2102 = vdwg.mxu0
  %v2103 = vadd.f32 %v1398, %v2098
  %v2104 = vshrl.u32 %v2059, 16
  %v2107 = vsel %vm484, %v2104, 0
  %2109 = vmatprep.subr.bf16.mxu0 0
  %2110 = vmatpush1.bf16.msra.mxu0 %v1530
  %2111 = vmatprep.subr.bf16.mxu0 0
  %2112 = vmatpush1.bf16.msra.mxu0 %v1531
  %2113 = vmatprep.subr.bf16.mxu0 0
  %2114 = vmatpush1.bf16.msra.mxu0 %v1532
  %2115 = vmatprep.subr.bf16.mxu0 0
  %2116 = vmatpush1.bf16.msra.mxu0 %v1533
  %2117 = vmatprep.subr.bf16.mxu0 0
  %2118 = vmatpush1.bf16.msra.mxu0 %v1534
  %2119 = vmatprep.subr.bf16.mxu0 0
  %2120 = vmatpush1.bf16.msra.mxu0 %v1535
  %2121 = vmatprep.subr.bf16.mxu0 0
  %2122 = vmatpush1.bf16.msra.mxu0 0
  %2123 = vmatprep.subr.bf16.mxu0 0
  %2124 = vmatpush1.bf16.msra.mxu0 0
  %2125 = vmatprep.subr.bf16.mxu0 0
  %2126 = vmatpush1.bf16.msra.mxu0 0
  %2127 = vmatprep.subr.bf16.mxu0 0
  %2128 = vmatpush1.bf16.msra.mxu0 0
  %2129 = vmatprep.subr.bf16.mxu0 0
  %2130 = vmatpush1.bf16.msra.mxu0 0
  %2131 = vmatprep.subr.bf16.mxu0 0
  %2132 = vmatpush1.bf16.msra.mxu0 0
  %2133 = vmatprep.subr.bf16.mxu0 0
  %2134 = vmatpush1.bf16.msra.mxu0 0
  %2135 = vmatprep.subr.bf16.mxu0 0
  %2136 = vmatpush1.bf16.msra.mxu0 0
  %2137 = vmatprep.subr.bf16.mxu0 0
  %2138 = vmatpush1.bf16.msra.mxu0 0
  %2139 = vmatprep.subr.bf16.mxu0 0
  %2140 = vmatpush1.bf16.msra.mxu0 0
  %2141 = vmatprep.mubr.bf16.mxu0 0
  %2142 = vmatmul.mubr.bf16.gmra.mrb[0].mxu0 %v2107
  %v2143 = vpop.f32.mrb[0].mxu0
  %v2144 = vadd.f32 0.0, %v2143
  %v2145 = vpop.f32.mrb[0].mxu0
  %v2146 = vpop.f32.mrb[0].mxu0
  %v2147 = vpop.f32.mrb[0].mxu0
  %2148 = vdwg.mxu0
  %v2149 = vadd.f32 %v2103, %v2144
  %v2151 = vrot.slane %v2059, 1
  %v2153 = vsel %vm484, %v2151, 0
  %2155 = vmatprep.subr.bf16.mxu0 0
  %2156 = vmatpush1.bf16.msra.mxu0 %v1625
  %2157 = vmatprep.subr.bf16.mxu0 0
  %2158 = vmatpush1.bf16.msra.mxu0 %v1626
  %2159 = vmatprep.subr.bf16.mxu0 0
  %2160 = vmatpush1.bf16.msra.mxu0 %v1627
  %2161 = vmatprep.subr.bf16.mxu0 0
  %2162 = vmatpush1.bf16.msra.mxu0 %v1628
  %2163 = vmatprep.subr.bf16.mxu0 0
  %2164 = vmatpush1.bf16.msra.mxu0 %v1629
  %2165 = vmatprep.subr.bf16.mxu0 0
  %2166 = vmatpush1.bf16.msra.mxu0 %v1630
  %2167 = vmatprep.subr.bf16.mxu0 0
  %2168 = vmatpush1.bf16.msra.mxu0 0
  %2169 = vmatprep.subr.bf16.mxu0 0
  %2170 = vmatpush1.bf16.msra.mxu0 0
  %2171 = vmatprep.subr.bf16.mxu0 0
  %2172 = vmatpush1.bf16.msra.mxu0 0
  %2173 = vmatprep.subr.bf16.mxu0 0
  %2174 = vmatpush1.bf16.msra.mxu0 0
  %2175 = vmatprep.subr.bf16.mxu0 0
  %2176 = vmatpush1.bf16.msra.mxu0 0
  %2177 = vmatprep.subr.bf16.mxu0 0
  %2178 = vmatpush1.bf16.msra.mxu0 0
  %2179 = vmatprep.subr.bf16.mxu0 0
  %2180 = vmatpush1.bf16.msra.mxu0 0
  %2181 = vmatprep.subr.bf16.mxu0 0
  %2182 = vmatpush1.bf16.msra.mxu0 0
  %2183 = vmatprep.subr.bf16.mxu0 0
  %2184 = vmatpush1.bf16.msra.mxu0 0
  %2185 = vmatprep.subr.bf16.mxu0 0
  %2186 = vmatpush1.bf16.msra.mxu0 0
  %2187 = vmatprep.mubr.bf16.mxu0 0
  %2188 = vmatmul.mubr.bf16.gmra.mrb[0].mxu0 %v2153
  %v2189 = vpop.f32.mrb[0].mxu0
  %v2190 = vadd.f32 0.0, %v2189
  %v2191 = vpop.f32.mrb[0].mxu0
  %v2192 = vpop.f32.mrb[0].mxu0
  %v2193 = vpop.f32.mrb[0].mxu0
  %2194 = vdwg.mxu0
  %v2195 = vadd.f32 %v2149, %v2190
  %v2196 = vmax.f32 %v2195, 0.0
  %v2197 = vpack.c.bf16 %v2196, %v2196
  %v2199 = vsel %vm1076, %v2197, 0
  %2201 = vmatprep.subr.bf16.mxu0 0
  %2202 = vmatpush1.bf16.msra.mxu0 %v1696
  %2203 = vmatprep.subr.bf16.mxu0 0
  %2204 = vmatpush1.bf16.msra.mxu0 %v1697
  %2205 = vmatprep.subr.bf16.mxu0 0
  %2206 = vmatpush1.bf16.msra.mxu0 0
  %2207 = vmatprep.subr.bf16.mxu0 0
  %2208 = vmatpush1.bf16.msra.mxu0 0
  %2209 = vmatprep.subr.bf16.mxu0 0
  %2210 = vmatpush1.bf16.msra.mxu0 0
  %2211 = vmatprep.subr.bf16.mxu0 0
  %2212 = vmatpush1.bf16.msra.mxu0 0
  %2213 = vmatprep.subr.bf16.mxu0 0
  %2214 = vmatpush1.bf16.msra.mxu0 0
  %2215 = vmatprep.subr.bf16.mxu0 0
  %2216 = vmatpush1.bf16.msra.mxu0 0
  %2217 = vmatprep.subr.bf16.mxu0 0
  %2218 = vmatpush1.bf16.msra.mxu0 0
  %2219 = vmatprep.subr.bf16.mxu0 0
  %2220 = vmatpush1.bf16.msra.mxu0 0
  %2221 = vmatprep.subr.bf16.mxu0 0
  %2222 = vmatpush1.bf16.msra.mxu0 0
  %2223 = vmatprep.subr.bf16.mxu0 0
  %2224 = vmatpush1.bf16.msra.mxu0 0
  %2225 = vmatprep.subr.bf16.mxu0 0
  %2226 = vmatpush1.bf16.msra.mxu0 0
  %2227 = vmatprep.subr.bf16.mxu0 0
  %2228 = vmatpush1.bf16.msra.mxu0 0
  %2229 = vmatprep.subr.bf16.mxu0 0
  %2230 = vmatpush1.bf16.msra.mxu0 0
  %2231 = vmatprep.subr.bf16.mxu0 0
  %2232 = vmatpush1.bf16.msra.mxu0 0
  %2233 = vmatprep.mubr.bf16.mxu0 0
  %2234 = vmatmul.mubr.bf16.gmra.mrb[0].mxu0 %v2199
  %v2235 = vpop.f32.mrb[0].mxu0
  %v2236 = vadd.f32 0.0, %v2235
  %v2237 = vpop.f32.mrb[0].mxu0
  %v2238 = vpop.f32.mrb[0].mxu0
  %v2239 = vpop.f32.mrb[0].mxu0
  %2240 = vdwg.mxu0
  %v2241 = vadd.f32 %v1683, %v2236
  %v2243 = vlaneseq
  %v2244 = vshrl.u32 %v2243, 7
  %v2245 = vsub.s32 0, %v2244
  %v2246 = vrot.slane %v2241, %v2245
  %vm2248 = vcmask 1040384
  %v2249 = vsel %vm2248, %v1743, %v2246
  %vm2250 = vcmask 254976
  %v2251 = vsel %vm2250, %v2249, 0.0
  %2252 = vadd.xlane.f32.xlu0 %v2251
  %v2253 = vpop.xlane.xlu0 %2252
  %v2254 = vrcp.pop 32.0
  %v2255 = vmul.f32 %v2253, %v2254
  %v2256 = vsub.f32 %v2249, %v2255
  %v2257 = vmul.f32 %v2256, %v2256
  %v2258 = vsel %vm2250, %v2257, 0.0
  %2259 = vadd.xlane.f32.xlu0 %v2258
  %v2260 = vpop.xlane.xlu0 %2259
  %v2261 = vmul.f32 %v2260, %v2254
  %v2262 = vadd.f32 %v2261, 1e-05
  %v2263 = vrsqrt.pop %v2262
  %v2264 = vmul.f32 %v2256, %v2263
  %v2265 = vld [vmem:[%s11 + $0x7] sm:$0x1]
  %v2267 = vlaneseq
  %v2268 = vshrl.u32 %v2267, 7
  %v2269 = vsub.s32 0, %v2268
  %v2270 = vrot.slane %v2265, %v2269
  %v2272 = vmul.f32 %v2264, %v2270
  %v2273 = vld [vmem:[%s11 + $0x8] sm:$0x1]
  %v2275 = vlaneseq
  %v2276 = vshrl.u32 %v2275, 7
  %v2277 = vsub.s32 0, %v2276
  %v2278 = vrot.slane %v2273, %v2277
  %v2280 = vadd.f32 %v2272, %v2278
  %v2281 = vtanh.pop %v2280
  %v2282 = vpack.c.bf16 %v2281, %v2281
  %v2283 = vld [vmem:[%s7] sm:$0xf]
  %v2284 = vld [vmem:[%s7 + $0x4] sm:$0xf]
  %v2285 = vld [vmem:[%s7 + $0x8] sm:$0xf]
  %v2286 = vld [vmem:[%s7 + $0xc] sm:$0xf]
  %v2287 = vld [vmem:[%s1] sm:$0x1]
  %v2288 = vld [vmem:[%s8] sm:$0x3]
  %vm2289 = vcmask 31744
  %v2291 = vsel %vm2289, %v2287, 0
  %vm2293 = vcmask 1041408
  %v2295 = vsel %vm2293, %v2288, 0
  %2297 = vmatprep.subr.bf16.mxu0 0
  %2298 = vmatpush1.bf16.msra.mxu0 %v2295
  %2299 = vmatprep.subr.bf16.mxu0 0
  %2300 = vmatpush1.bf16.msra.mxu0 0
  %2301 = vmatprep.subr.bf16.mxu0 0
  %2302 = vmatpush1.bf16.msra.mxu0 0
  %2303 = vmatprep.subr.bf16.mxu0 0
  %2304 = vmatpush1.bf16.msra.mxu0 0
  %2305 = vmatprep.subr.bf16.mxu0 0
  %2306 = vmatpush1.bf16.msra.mxu0 0
  %2307 = vmatprep.subr.bf16.mxu0 0
  %2308 = vmatpush1.bf16.msra.mxu0 0
  %2309 = vmatprep.subr.bf16.mxu0 0
  %2310 = vmatpush1.bf16.msra.mxu0 0
  %2311 = vmatprep.subr.bf16.mxu0 0
  %2312 = vmatpush1.bf16.msra.mxu0 0
  %2313 = vmatprep.subr.bf16.mxu0 0
  %2314 = vmatpush1.bf16.msra.mxu0 0
  %2315 = vmatprep.subr.bf16.mxu0 0
  %2316 = vmatpush1.bf16.msra.mxu0 0
  %2317 = vmatprep.subr.bf16.mxu0 0
  %2318 = vmatpush1.bf16.msra.mxu0 0
  %2319 = vmatprep.subr.bf16.mxu0 0
  %2320 = vmatpush1.bf16.msra.mxu0 0
  %2321 = vmatprep.subr.bf16.mxu0 0
  %2322 = vmatpush1.bf16.msra.mxu0 0
  %2323 = vmatprep.subr.bf16.mxu0 0
  %2324 = vmatpush1.bf16.msra.mxu0 0
  %2325 = vmatprep.subr.bf16.mxu0 0
  %2326 = vmatpush1.bf16.msra.mxu0 0
  %2327 = vmatprep.subr.bf16.mxu0 0
  %2328 = vmatpush1.bf16.msra.mxu0 0
  %2329 = vmatprep.mubr.bf16.mxu0 0
  %2330 = vmatmul.mubr.bf16.gmra.mrb[0].mxu0 %v2291
  %v2331 = vpop.f32.mrb[0].mxu0
  %v2332 = vadd.f32 0.0, %v2331
  %v2333 = vpop.f32.mrb[0].mxu0
  %v2334 = vpop.f32.mrb[0].mxu0
  %v2335 = vpop.f32.mrb[0].mxu0
  %2336 = vdwg.mxu0
  %v2341 = vunpack.c.l.b16 %v2283
  %v2342 = vunpack.c.l.b16 %v2284
  %v2343 = vunpack.c.l.b16 %v2285
  %v2344 = vunpack.c.l.b16 %v2286
  %v2345 = vpack.c.b16 %v2342, %v2341
  %v2346 = vpack.c.b16 %v2344, %v2343
  %v2350 = vsel %vm1076, %v2282, 0
  %2352 = vmatprep.subr.bf16.mxu0 0
  %2353 = vmatpush1.bf16.msra.mxu0 %v2345
  %2354 = vmatprep.subr.bf16.mxu0 0
  %2355 = vmatpush1.bf16.msra.mxu0 %v2346
  %2356 = vmatprep.subr.bf16.mxu0 0
  %2357 = vmatpush1.bf16.msra.mxu0 0
  %2358 = vmatprep.subr.bf16.mxu0 0
  %2359 = vmatpush1.bf16.msra.mxu0 0
  %2360 = vmatprep.subr.bf16.mxu0 0
  %2361 = vmatpush1.bf16.msra.mxu0 0
  %2362 = vmatprep.subr.bf16.mxu0 0
  %2363 = vmatpush1.bf16.msra.mxu0 0
  %2364 = vmatprep.subr.bf16.mxu0 0
  %2365 = vmatpush1.bf16.msra.mxu0 0
  %2366 = vmatprep.subr.bf16.mxu0 0
  %2367 = vmatpush1.bf16.msra.mxu0 0
  %2368 = vmatprep.subr.bf16.mxu0 0
  %2369 = vmatpush1.bf16.msra.mxu0 0
  %2370 = vmatprep.subr.bf16.mxu0 0
  %2371 = vmatpush1.bf16.msra.mxu0 0
  %2372 = vmatprep.subr.bf16.mxu0 0
  %2373 = vmatpush1.bf16.msra.mxu0 0
  %2374 = vmatprep.subr.bf16.mxu0 0
  %2375 = vmatpush1.bf16.msra.mxu0 0
  %2376 = vmatprep.subr.bf16.mxu0 0
  %2377 = vmatpush1.bf16.msra.mxu0 0
  %2378 = vmatprep.subr.bf16.mxu0 0
  %2379 = vmatpush1.bf16.msra.mxu0 0
  %2380 = vmatprep.subr.bf16.mxu0 0
  %2381 = vmatpush1.bf16.msra.mxu0 0
  %2382 = vmatprep.subr.bf16.mxu0 0
  %2383 = vmatpush1.bf16.msra.mxu0 0
  %2384 = vmatprep.mubr.bf16.mxu0 0
  %2385 = vmatmul.mubr.bf16.gmra.mrb[0].mxu0 %v2350
  %v2386 = vpop.f32.mrb[0].mxu0
  %v2387 = vadd.f32 %v2332, %v2386
  %v2388 = vpop.f32.mrb[0].mxu0
  %v2389 = vpop.f32.mrb[0].mxu0
  %v2390 = vpop.f32.mrb[0].mxu0
  %2391 = vdwg.mxu0
  %v2392 = vld [vmem:[%s11 + $0x9] sm:$0x1]
  %v2394 = vlaneseq
  %v2395 = vshrl.u32 %v2394, 7
  %v2396 = vsub.s32 0, %v2395
  %v2397 = vrot.slane %v2392, %v2396
  %v2399 = vadd.f32 %v2387, %v2397
  %v2400 = vmax.f32 %v2399, 0.0
  %v2401 = vpack.c.bf16 %v2400, %v2400
  %v2402 = vld [vmem:[%s9] sm:$0xf]
  %v2403 = vld [vmem:[%s9 + $0x4] sm:$0xf]
  %v2404 = vld [vmem:[%s9 + $0x8] sm:$0xf]
  %v2405 = vld [vmem:[%s9 + $0xc] sm:$0xf]
  %v2406 = vld [vmem:[%s9 + $0x10] sm:$0xf]
  %v2407 = vld [vmem:[%s9 + $0x14] sm:$0xf]
  %v2408 = vld [vmem:[%s9 + $0x18] sm:$0xf]
  %v2409 = vld [vmem:[%s9 + $0x1c] sm:$0xf]
  %v2410 = vld [vmem:[%s11 + $0xa] sm:$0x1]
  %v2412 = vlaneseq
  %v2413 = vshrl.u32 %v2412, 7
  %v2414 = vsub.s32 0, %v2413
  %v2415 = vrot.slane %v2410, %v2414
  %v2425 = vunpack.c.l.b16 %v2402
  %v2426 = vunpack.c.l.b16 %v2403
  %v2427 = vunpack.c.l.b16 %v2404
  %v2428 = vunpack.c.l.b16 %v2405
  %v2429 = vunpack.c.l.b16 %v2406
  %v2430 = vunpack.c.l.b16 %v2407
  %v2431 = vunpack.c.l.b16 %v2408
  %v2432 = vunpack.c.l.b16 %v2409
  %v2433 = vpack.c.b16 %v2426, %v2425
  %v2434 = vpack.c.b16 %v2428, %v2427
  %v2435 = vpack.c.b16 %v2430, %v2429
  %v2436 = vpack.c.b16 %v2432, %v2431
  %vm2441 = vcmask 523264
  %v2443 = vsel %vm2441, %v2401, 0
  %2445 = vmatprep.subr.bf16.mxu0 0
  %2446 = vmatpush1.bf16.msra.mxu0 %v2433
  %2447 = vmatprep.subr.bf16.mxu0 0
  %2448 = vmatpush1.bf16.msra.mxu0 %v2434
  %2449 = vmatprep.subr.bf16.mxu0 0
  %2450 = vmatpush1.bf16.msra.mxu0 %v2435
  %2451 = vmatprep.subr.bf16.mxu0 0
  %2452 = vmatpush1.bf16.msra.mxu0 %v2436
  %2453 = vmatprep.subr.bf16.mxu0 0
  %2454 = vmatpush1.bf16.msra.mxu0 0
  %2455 = vmatprep.subr.bf16.mxu0 0
  %2456 = vmatpush1.bf16.msra.mxu0 0
  %2457 = vmatprep.subr.bf16.mxu0 0
  %2458 = vmatpush1.bf16.msra.mxu0 0
  %2459 = vmatprep.subr.bf16.mxu0 0
  %2460 = vmatpush1.bf16.msra.mxu0 0
  %2461 = vmatprep.subr.bf16.mxu0 0
  %2462 = vmatpush1.bf16.msra.mxu0 0
  %2463 = vmatprep.subr.bf16.mxu0 0
  %2464 = vmatpush1.bf16.msra.mxu0 0
  %2465 = vmatprep.subr.bf16.mxu0 0
  %2466 = vmatpush1.bf16.msra.mxu0 0
  %2467 = vmatprep.subr.bf16.mxu0 0
  %2468 = vmatpush1.bf16.msra.mxu0 0
  %2469 = vmatprep.subr.bf16.mxu0 0
  %2470 = vmatpush1.bf16.msra.mxu0 0
  %2471 = vmatprep.subr.bf16.mxu0 0
  %2472 = vmatpush1.bf16.msra.mxu0 0
  %2473 = vmatprep.subr.bf16.mxu0 0
  %2474 = vmatpush1.bf16.msra.mxu0 0
  %2475 = vmatprep.subr.bf16.mxu0 0
  %2476 = vmatpush1.bf16.msra.mxu0 0
  %2477 = vmatprep.mubr.bf16.mxu0 0
  %2478 = vmatmul.mubr.bf16.gmra.mrb[0].mxu0 %v2443
  %v2479 = vpop.f32.mrb[0].mxu0
  %v2480 = vadd.f32 %v2415, %v2479
  %v2481 = vpop.f32.mrb[0].mxu0
  %v2482 = vpop.f32.mrb[0].mxu0
  %v2483 = vpop.f32.mrb[0].mxu0
  %2484 = vdwg.mxu0
  %v2485 = vmax.f32 %v2480, 0.0
  %v2486 = vpack.c.bf16 %v2485, %v2485
  %v2487 = vld [vmem:[%s10] sm:$0xf]
  %v2488 = vld [vmem:[%s10 + $0x4] sm:$0xf]
  %v2489 = vld [vmem:[%s10 + $0x8] sm:$0xf]
  %v2490 = vld [vmem:[%s10 + $0xc] sm:$0xf]
  %v2491 = vld [vmem:[%s10 + $0x10] sm:$0xf]
  %v2492 = vld [vmem:[%s10 + $0x14] sm:$0xf]
  %v2493 = vld [vmem:[%s10 + $0x18] sm:$0xf]
  %v2494 = vld [vmem:[%s10 + $0x1c] sm:$0xf]
  %v2495 = vld [vmem:[%s11 + $0xb] sm:$0x1]
  %v2497 = vlaneseq
  %v2498 = vshrl.u32 %v2497, 7
  %v2499 = vsub.s32 0, %v2498
  %v2500 = vrot.slane %v2495, %v2499
  %v2510 = vunpack.c.l.b16 %v2487
  %v2511 = vunpack.c.l.b16 %v2488
  %v2512 = vunpack.c.l.b16 %v2489
  %v2513 = vunpack.c.l.b16 %v2490
  %v2514 = vunpack.c.l.b16 %v2491
  %v2515 = vunpack.c.l.b16 %v2492
  %v2516 = vunpack.c.l.b16 %v2493
  %v2517 = vunpack.c.l.b16 %v2494
  %v2518 = vpack.c.b16 %v2511, %v2510
  %v2519 = vpack.c.b16 %v2513, %v2512
  %v2520 = vpack.c.b16 %v2515, %v2514
  %v2521 = vpack.c.b16 %v2517, %v2516
  %v2527 = vsel %vm2441, %v2486, 0
  %2529 = vmatprep.subr.bf16.mxu0 0
  %2530 = vmatpush1.bf16.msra.mxu0 %v2518
  %2531 = vmatprep.subr.bf16.mxu0 0
  %2532 = vmatpush1.bf16.msra.mxu0 %v2519
  %2533 = vmatprep.subr.bf16.mxu0 0
  %2534 = vmatpush1.bf16.msra.mxu0 %v2520
  %2535 = vmatprep.subr.bf16.mxu0 0
  %2536 = vmatpush1.bf16.msra.mxu0 %v2521
  %2537 = vmatprep.subr.bf16.mxu0 0
  %2538 = vmatpush1.bf16.msra.mxu0 0
  %2539 = vmatprep.subr.bf16.mxu0 0
  %2540 = vmatpush1.bf16.msra.mxu0 0
  %2541 = vmatprep.subr.bf16.mxu0 0
  %2542 = vmatpush1.bf16.msra.mxu0 0
  %2543 = vmatprep.subr.bf16.mxu0 0
  %2544 = vmatpush1.bf16.msra.mxu0 0
  %2545 = vmatprep.subr.bf16.mxu0 0
  %2546 = vmatpush1.bf16.msra.mxu0 0
  %2547 = vmatprep.subr.bf16.mxu0 0
  %2548 = vmatpush1.bf16.msra.mxu0 0
  %2549 = vmatprep.subr.bf16.mxu0 0
  %2550 = vmatpush1.bf16.msra.mxu0 0
  %2551 = vmatprep.subr.bf16.mxu0 0
  %2552 = vmatpush1.bf16.msra.mxu0 0
  %2553 = vmatprep.subr.bf16.mxu0 0
  %2554 = vmatpush1.bf16.msra.mxu0 0
  %2555 = vmatprep.subr.bf16.mxu0 0
  %2556 = vmatpush1.bf16.msra.mxu0 0
  %2557 = vmatprep.subr.bf16.mxu0 0
  %2558 = vmatpush1.bf16.msra.mxu0 0
  %2559 = vmatprep.subr.bf16.mxu0 0
  %2560 = vmatpush1.bf16.msra.mxu0 0
  %2561 = vmatprep.mubr.bf16.mxu0 0
  %2562 = vmatmul.mubr.bf16.gmra.mrb[0].mxu0 %v2527
  %v2563 = vpop.f32.mrb[0].mxu0
  %v2564 = vadd.f32 %v2500, %v2563
  %v2565 = vpop.f32.mrb[0].mxu0
  %v2566 = vpop.f32.mrb[0].mxu0
  %v2567 = vpop.f32.mrb[0].mxu0
  %2568 = vdwg.mxu0
  %vm2569 = vcmask 9216
  %2570 = vst.msk [vmem:[%s12] sm:$0x3] %vm2569, %v2564
  // Predicated region
  $region50: #{forward.1} parent=0 // pred_check
    _
  $region51: #{forward.1} parent=0 // pred_check_branch
    %2572 = sbr.rel (0) target = $region53
  $region52: #{forward.1} parent=0 // pred_region
    _
  $region53: #{forward.1} parent=0 // pred_fallthru
    _
  // Predicated region
  $region54: #{forward.1} parent=0 // pred_check
    _
  $region55: #{forward.1} parent=0 // pred_check_branch
    %2574 = sbr.rel (0) target = $region57
  $region56: #{forward.1} parent=0 // pred_region
    _
  $region57: #{forward.1} parent=0 // pred_fallthru
    _

</llo_original>
